<compile_context>
chip_gen: v7x
topology: tpu7x:2x2x1
jax: 0.10.0
libtpu: 0.0.40
codegen_flags: <defaults>
</compile_context>

<pallas_src>
import functools

import jax
import jax.numpy as jnp
from jax import lax
from jax.experimental import pallas as pl
from jax.experimental.pallas import tpu as pltpu

LANE = 128        # lane padding for output channels / embed dim.
                  # (On v6e/v7x at production depth, raising this to 256 fills
                  #  the full 256-wide MXU columns for the deeper layers.)
TM_TARGET = 512   # target rows per grid step (amortize ~0.35us/step overhead)


def _round_up(x, m):
    return (x + m - 1) // m * m


def _choose_tm(m):
    """Row tile: single full block for small M; otherwise ~TM_TARGET rows,
    a multiple of 16 (bf16 sublane packing), with an even number of grid
    steps so v7x's two TensorCores split the parallel grid evenly."""
    if m <= 2 * TM_TARGET:
        return m                      # block == full dim (always legal)
    steps = pl.cdiv(m, TM_TARGET)
    if steps % 2:
        steps += 1
    return _round_up(pl.cdiv(m, steps), 16)


# ----------------------------- Pallas kernel --------------------------------
def _matmul_bias_act_kernel(x_ref, w_ref, b_ref, o_ref, *, apply_relu):
    acc = jnp.dot(x_ref[...], w_ref[...], preferred_element_type=jnp.float32)
    acc = acc + b_ref[...]                       # f32 bias
    if apply_relu:
        acc = jnp.maximum(acc, 0.0)
    o_ref[...] = acc.astype(o_ref.dtype)


def matmul_bias_act(x, w, b, *, apply_relu=True, out_dtype=None):
    """y = act(x @ w + b).  x: [M, K], w: [K, N], b: [1, N] -> [M, N].

    N must be lane-dense (multiple of 128); callers pad weights/bias once at
    prepare time.  M is not padded: grid uses cdiv and the trailing partial
    block's out-of-bounds rows are masked by Pallas (rows are independent in
    a matmul, so garbage padded rows cannot contaminate valid rows)."""
    M, K = x.shape
    K2, N = w.shape
    assert K == K2 and b.shape == (1, N)
    assert N % LANE == 0, "pad weights/bias to a lane-dense width"
    out_dtype = out_dtype or x.dtype
    tm = _choose_tm(M)
    grid = pl.cdiv(M, tm)
    kernel = functools.partial(_matmul_bias_act_kernel, apply_relu=apply_relu)
    return pl.pallas_call(
        kernel,
        out_shape=jax.ShapeDtypeStruct((M, N), out_dtype),
        grid_spec=pltpu.PrefetchScalarGridSpec(
            num_scalar_prefetch=0,
            grid=(grid,),
            in_specs=[
                pl.BlockSpec((tm, K), lambda i: (i, 0)),   # activation tile
                pl.BlockSpec((K, N), lambda i: (0, 0)),    # full weight (VMEM)
                pl.BlockSpec((1, N), lambda i: (0, 0)),    # bias row
            ],
            out_specs=pl.BlockSpec((tm, N), lambda i: (i, 0)),
        ),
        compiler_params=pltpu.CompilerParams(
            dimension_semantics=("parallel",)),
    )(x, w, b)


# ----------------------------- conv via im2col -------------------------------
def conv2d_relu(x_nhwc, c_real, w_mat, bias, *, kernel=4, stride=2):
    """Conv2d(k, stride, pad=0) + ReLU.  x_nhwc may carry padded (zero)
    channels; only the first c_real channels are gathered into the patches."""
    B, H, W, _ = x_nhwc.shape
    OH = (H - kernel) // stride + 1
    OW = (W - kernel) // stride + 1
    cols = []
    for di in range(kernel):
        for dj in range(kernel):
            cols.append(x_nhwc[:, di:di + stride * OH:stride,
                               dj:dj + stride * OW:stride, :c_real])
    patches = jnp.concatenate(cols, axis=-1)              # [B, OH, OW, k*k*C]
    patches = patches.reshape(B * OH * OW, kernel * kernel * c_real)
    oc_pad = w_mat.shape[1]
    y = matmul_bias_act(patches, w_mat, bias, apply_relu=True,
                        out_dtype=x_nhwc.dtype)           # bf16 activations
    return y.reshape(B, OH, OW, oc_pad)


# ----------------------------- parameter init --------------------------------
def init_conv_encoder(key, input_shape, embed_size=None, depth=32):
    """Raw PyTorch-default-style (uniform +-1/sqrt(fan_in)) parameters."""
    kernels = [4, 4, 4, 4]
    raw = {"conv": []}
    c_in, h, w = input_shape
    for i, k in enumerate(kernels):
        out_ch = depth * 2 ** i
        key, k1, k2 = jax.random.split(key, 3)
        bound = 1.0 / float(c_in * k * k) ** 0.5
        Wc = jax.random.uniform(k1, (out_ch, c_in, k, k), jnp.float32,
                                -bound, bound)
        Bc = jax.random.uniform(k2, (out_ch,), jnp.float32, -bound, bound)
        raw["conv"].append((Wc, Bc))
        c_in = out_ch
        h = (h - k) // 2 + 1
        w = (w - k) // 2 + 1
    feat = c_in * h * w
    if embed_size is not None:
        key, k1, k2 = jax.random.split(key, 3)
        bound = 1.0 / float(feat) ** 0.5
        Wf = jax.random.uniform(k1, (embed_size, feat), jnp.float32,
                                -bound, bound)
        Bf = jax.random.uniform(k2, (embed_size,), jnp.float32, -bound, bound)
        raw["fc"] = (Wf, Bf)
    return raw


def prepare_params(raw, input_shape, compute_dtype=jnp.bfloat16):
    """One-time layout/precision prep (hoisted out of the forward hot path):
      * conv weights -> [k*k*C_in, OC_pad] compute_dtype (lane-dense OC),
      * biases       -> [1, OC_pad] f32 (zero padded),
      * fc weight    -> pre-transposed and permuted to consume the NHWC-padded
                        flatten directly, padded to [feat_pad, E_pad]."""
    prep = {"conv": [], "compute_dtype": compute_dtype}
    c_in, h, w = input_shape
    for Wc, Bc in raw["conv"]:
        oc, ic, kh, kw = Wc.shape
        assert ic == c_in
        oc_pad = _round_up(oc, LANE)
        w_mat = jnp.transpose(Wc, (2, 3, 1, 0)).reshape(kh * kw * ic, oc)
        w_mat = jnp.pad(w_mat, ((0, 0), (0, oc_pad - oc))).astype(compute_dtype)
        b_row = jnp.pad(Bc, (0, oc_pad - oc)).reshape(1, oc_pad).astype(jnp.float32)
        prep["conv"].append({"w": w_mat, "b": b_row, "c_in": c_in, "oc": oc,
                             "k": kh, "stride": 2})
        c_in = oc
        h = (h - kh) // 2 + 1
        w = (w - kw) // 2 + 1
    prep["out_spatial"] = (h, w)
    prep["out_channels"] = c_in
    if "fc" in raw:
        Wf, Bf = raw["fc"]
        e = Wf.shape[0]
        oc = prep["conv"][-1]["oc"]
        oc_pad = _round_up(oc, LANE)
        e_pad = _round_up(e, LANE)
        # PyTorch fc expects (c, h, w)-ordered features of the NCHW flatten.
        # Permute its rows to (h, w, c_padded) order so the kernel path can
        # flatten the NHWC-padded activation with a free reshape.
        w4 = Wf.reshape(e, oc, h, w).transpose(2, 3, 1, 0)      # [h, w, oc, e]
        w4 = jnp.pad(w4, ((0, 0), (0, 0), (0, oc_pad - oc), (0, e_pad - e)))
        prep["fc"] = {
            "w": w4.reshape(h * w * oc_pad, e_pad).astype(compute_dtype),
            "b": jnp.pad(Bf, (0, e_pad - e)).reshape(1, e_pad).astype(jnp.float32),
            "e": e,
        }
    return prep


# ----------------------------- forward ----------------------------------------
def conv_encoder_forward(params, x):
    """x: NCHW [B,C,H,W] or [B,T,C,H,W] (matches ConvEncoder.forward)."""
    time_dim = x.ndim == 5
    if time_dim:
        b, t = x.shape[:2]
        x = x.reshape((b * t,) + x.shape[2:])
    cdt = params["compute_dtype"]
    h = jnp.transpose(x, (0, 2, 3, 1)).astype(cdt)        # NCHW -> NHWC, bf16
    for layer in params["conv"]:
        h = conv2d_relu(h, layer["c_in"], layer["w"], layer["b"],
                        kernel=layer["k"], stride=layer["stride"])
    if "fc" in params:
        # Free reshape: fc weight was permuted at prepare time to absorb the
        # NHWC->NCHW transpose and the padded-channel slice.
        flat = h.reshape(h.shape[0], -1)
        out = matmul_bias_act(flat, params["fc"]["w"], params["fc"]["b"],
                              apply_relu=True, out_dtype=jnp.float32)
        out = out[:, :params["fc"]["e"]]
    else:
        oc = params["out_channels"]
        out = jnp.transpose(h[..., :oc], (0, 3, 1, 2))    # NHWC -> NCHW
        out = out.reshape(out.shape[0], -1).astype(jnp.float32)
    if time_dim:
        out = out.reshape(b, t, -1)
    return out


# ----------------------------- pure-JAX reference ------------------------------
def reference_forward(raw, x, compute_dtype=jnp.float32):
    """compute_dtype=float32 -> exact PyTorch f32 semantics.
    compute_dtype=bfloat16 -> mirrors the kernel path's precision
    (bf16 operands, f32 accumulation, f32 bias+ReLU, bf16 activations)."""
    time_dim = x.ndim == 5
    if time_dim:
        b, t = x.shape[:2]
        x = x.reshape((b * t,) + x.shape[2:])
    h = x.astype(compute_dtype)
    for Wc, Bc in raw["conv"]:
        h = lax.conv_general_dilated(
            h, Wc.astype(compute_dtype), (2, 2), "VALID",
            dimension_numbers=("NCHW", "OIHW", "NCHW"),
            preferred_element_type=jnp.float32)
        h = jax.nn.relu(h + Bc[None, :, None, None]).astype(compute_dtype)
    flat = h.reshape(h.shape[0], -1)
    if "fc" in raw:
        Wf, Bf = raw["fc"]
        flat = jax.nn.relu(
            jnp.dot(flat, Wf.T.astype(compute_dtype),
                    preferred_element_type=jnp.float32) + Bf)
    out = flat.astype(jnp.float32)
    if time_dim:
        out = out.reshape(b, t, -1)
    return out


if __name__ == "__main__":
    # Small but conv-stack-compatible shapes: 48 -> 23 -> 10 -> 4 -> 1 spatially.
    input_shape = (4, 48, 48)     # (C, H, W)
    depth = 8                     # channels: 8, 16, 32, 64 ; flatten feat = 64
    embed_size = 32
    batch, time = 2, 3

    key = jax.random.PRNGKey(0)
    key, kp, kx, kxt = jax.random.split(key, 4)
    raw = init_conv_encoder(kp, input_shape, embed_size=embed_size, depth=depth)
    params = prepare_params(raw, input_shape, compute_dtype=jnp.bfloat16)

    x = jax.random.normal(kx, (batch,) + input_shape, jnp.float32)
    xt = jax.random.normal(kxt, (batch, time) + input_shape, jnp.float32)

    fwd = jax.jit(functools.partial(conv_encoder_forward, params))
    y = jax.block_until_ready(fwd(x))
    yt = jax.block_until_ready(fwd(xt))

    assert y.shape == (batch, embed_size)
    assert yt.shape == (batch, time, embed_size)

    # Tight check vs a precision-matched (bf16 operand / f32 accum) reference.
    y_ref_bf16 = reference_forward(raw, x, compute_dtype=jnp.bfloat16)
    yt_ref_bf16 = reference_forward(raw, xt, compute_dtype=jnp.bfloat16)
    assert jnp.allclose(y, y_ref_bf16, atol=5e-3, rtol=5e-3)
    assert jnp.allclose(yt, yt_ref_bf16, atol=5e-3, rtol=5e-3)

    # Loose check vs the exact f32 (PyTorch-semantics) reference.
    y_ref_f32 = reference_forward(raw, x)
    yt_ref_f32 = reference_forward(raw, xt)
    assert jnp.allclose(y, y_ref_f32, atol=5e-2, rtol=5e-2)
    assert jnp.allclose(yt, yt_ref_f32, atol=5e-2, rtol=5e-2)

    print("KERNEL_OK")
</pallas_src>

<mosaic_0001>
module attributes {stable_mosaic.version = 11 : i64} {
  func.func @_matmul_bias_act_kernel(%arg0: i32, %arg1: memref<272x64xbf16, #tpu.memory_space<vmem>>, %arg2: memref<64x128xbf16, #tpu.memory_space<vmem>>, %arg3: memref<1x128xf32, #tpu.memory_space<vmem>>, %arg4: memref<272x128xbf16, #tpu.memory_space<vmem>>) attributes {dimension_semantics = [#tpu.dimension_semantics<parallel>], iteration_bounds = array<i64: 4>, scalar_prefetch = 0 : i64, scratch_operands = 0 : i64, tpu.core_type = #tpu.core_type<tc>, window_params = [{transform_indices = @transform_0, window_bounds = array<i64: 272, 64>}, {pipeline_mode = #tpu.pipeline_mode<synchronous>, transform_indices = @transform_1, window_bounds = array<i64: 64, 128>}, {pipeline_mode = #tpu.pipeline_mode<synchronous>, transform_indices = @transform_2, window_bounds = array<i64: 1, 128>}, {transform_indices = @transform_3, window_bounds = array<i64: 272, 128>}]} {
    %c0 = arith.constant 0 : index
    %c0_0 = arith.constant 0 : index
    %0 = vector.load %arg1[%c0, %c0_0] : memref<272x64xbf16, #tpu.memory_space<vmem>>, vector<272x64xbf16>
    %c0_1 = arith.constant 0 : index
    %c0_2 = arith.constant 0 : index
    %1 = vector.load %arg2[%c0_1, %c0_2] : memref<64x128xbf16, #tpu.memory_space<vmem>>, vector<64x128xbf16>
    %cst = arith.constant dense<0.000000e+00> : vector<272x128xf32>
    %2 = tpu.matmul %0, %1, %cst {dimension_numbers = #tpu.dot_dimension_numbers<[1], [0], [0], [1], [0, 0, 1, 1], [], []>} : vector<272x64xbf16>, vector<64x128xbf16>, vector<272x128xf32> -> vector<272x128xf32>
    %c0_3 = arith.constant 0 : index
    %c0_4 = arith.constant 0 : index
    %3 = vector.load %arg3[%c0_3, %c0_4] : memref<1x128xf32, #tpu.memory_space<vmem>>, vector<1x128xf32>
    %4 = vector.broadcast %3 : vector<1x128xf32> to vector<272x128xf32>
    %5 = arith.addf %2, %4 : vector<272x128xf32>
    %cst_5 = arith.constant 0.000000e+00 : f32
    %6 = vector.broadcast %cst_5 : f32 to vector<272x128xf32>
    %7 = arith.maximumf %5, %6 : vector<272x128xf32>
    %8 = arith.truncf %7 : vector<272x128xf32> to vector<272x128xbf16>
    %c0_6 = arith.constant 0 : index
    %c0_7 = arith.constant 0 : index
    %9 = vector.load %arg4[%c0_6, %c0_7] : memref<272x128xbf16, #tpu.memory_space<vmem>>, vector<272x128xbf16>
    tpu.vector_store %arg4[%c0_6, %c0_7], %8 {strides = array<i32>} : memref<272x128xbf16, #tpu.memory_space<vmem>>, vector<272x128xbf16>,
    return
  }
  func.func @transform_0(%arg0: i32) -> (i32, i32) {
    %c0_i32 = arith.constant 0 : i32
    %c0_i32_0 = arith.constant 0 : i32
    return %arg0, %c0_i32 : i32, i32
  }
  func.func @transform_1(%arg0: i32) -> (i32, i32) {
    %c0_i32 = arith.constant 0 : i32
    %c0_i32_0 = arith.constant 0 : i32
    %c0_i32_1 = arith.constant 0 : i32
    return %c0_i32, %c0_i32_0 : i32, i32
  }
  func.func @transform_2(%arg0: i32) -> (i32, i32) {
    %c0_i32 = arith.constant 0 : i32
    %c0_i32_0 = arith.constant 0 : i32
    %c0_i32_1 = arith.constant 0 : i32
    return %c0_i32, %c0_i32_0 : i32, i32
  }
  func.func @transform_3(%arg0: i32) -> (i32, i32) {
    %c0_i32 = arith.constant 0 : i32
    %c0_i32_0 = arith.constant 0 : i32
    return %arg0, %c0_i32 : i32, i32
  }
}

module attributes {stable_mosaic.version = 11 : i64} {
  func.func @_matmul_bias_act_kernel(%arg0: i32, %arg1: memref<200x128xbf16, #tpu.memory_space<vmem>>, %arg2: memref<128x128xbf16, #tpu.memory_space<vmem>>, %arg3: memref<1x128xf32, #tpu.memory_space<vmem>>, %arg4: memref<200x128xbf16, #tpu.memory_space<vmem>>) attributes {dimension_semantics = [#tpu.dimension_semantics<parallel>], iteration_bounds = array<i64: 1>, scalar_prefetch = 0 : i64, scratch_operands = 0 : i64, tpu.core_type = #tpu.core_type<tc>, window_params = [{transform_indices = @transform_0, window_bounds = array<i64: 200, 128>}, {pipeline_mode = #tpu.pipeline_mode<synchronous>, transform_indices = @transform_1, window_bounds = array<i64: 128, 128>}, {pipeline_mode = #tpu.pipeline_mode<synchronous>, transform_indices = @transform_2, window_bounds = array<i64: 1, 128>}, {transform_indices = @transform_3, window_bounds = array<i64: 200, 128>}]} {
    %c0 = arith.constant 0 : index
    %c0_0 = arith.constant 0 : index
    %0 = vector.load %arg1[%c0, %c0_0] : memref<200x128xbf16, #tpu.memory_space<vmem>>, vector<200x128xbf16>
    %c0_1 = arith.constant 0 : index
    %c0_2 = arith.constant 0 : index
    %1 = vector.load %arg2[%c0_1, %c0_2] : memref<128x128xbf16, #tpu.memory_space<vmem>>, vector<128x128xbf16>
    %cst = arith.constant dense<0.000000e+00> : vector<200x128xf32>
    %2 = tpu.matmul %0, %1, %cst {dimension_numbers = #tpu.dot_dimension_numbers<[1], [0], [0], [1], [0, 0, 1, 1], [], []>} : vector<200x128xbf16>, vector<128x128xbf16>, vector<200x128xf32> -> vector<200x128xf32>
    %c0_3 = arith.constant 0 : index
    %c0_4 = arith.constant 0 : index
    %3 = vector.load %arg3[%c0_3, %c0_4] : memref<1x128xf32, #tpu.memory_space<vmem>>, vector<1x128xf32>
    %4 = vector.broadcast %3 : vector<1x128xf32> to vector<200x128xf32>
    %5 = arith.addf %2, %4 : vector<200x128xf32>
    %cst_5 = arith.constant 0.000000e+00 : f32
    %6 = vector.broadcast %cst_5 : f32 to vector<200x128xf32>
    %7 = arith.maximumf %5, %6 : vector<200x128xf32>
    %8 = arith.truncf %7 : vector<200x128xf32> to vector<200x128xbf16>
    %c0_6 = arith.constant 0 : index
    %c0_7 = arith.constant 0 : index
    %9 = vector.load %arg4[%c0_6, %c0_7] : memref<200x128xbf16, #tpu.memory_space<vmem>>, vector<200x128xbf16>
    tpu.vector_store %arg4[%c0_6, %c0_7], %8 {strides = array<i32>} : memref<200x128xbf16, #tpu.memory_space<vmem>>, vector<200x128xbf16>,
    return
  }
  func.func @transform_0(%arg0: i32) -> (i32, i32) {
    %c0_i32 = arith.constant 0 : i32
    %c0_i32_0 = arith.constant 0 : i32
    return %arg0, %c0_i32 : i32, i32
  }
  func.func @transform_1(%arg0: i32) -> (i32, i32) {
    %c0_i32 = arith.constant 0 : i32
    %c0_i32_0 = arith.constant 0 : i32
    %c0_i32_1 = arith.constant 0 : i32
    return %c0_i32, %c0_i32_0 : i32, i32
  }
  func.func @transform_2(%arg0: i32) -> (i32, i32) {
    %c0_i32 = arith.constant 0 : i32
    %c0_i32_0 = arith.constant 0 : i32
    %c0_i32_1 = arith.constant 0 : i32
    return %c0_i32, %c0_i32_0 : i32, i32
  }
  func.func @transform_3(%arg0: i32) -> (i32, i32) {
    %c0_i32 = arith.constant 0 : i32
    %c0_i32_0 = arith.constant 0 : i32
    return %arg0, %c0_i32 : i32, i32
  }
}

module attributes {stable_mosaic.version = 11 : i64} {
  func.func @_matmul_bias_act_kernel(%arg0: i32, %arg1: memref<32x256xbf16, #tpu.memory_space<vmem>>, %arg2: memref<256x128xbf16, #tpu.memory_space<vmem>>, %arg3: memref<1x128xf32, #tpu.memory_space<vmem>>, %arg4: memref<32x128xbf16, #tpu.memory_space<vmem>>) attributes {dimension_semantics = [#tpu.dimension_semantics<parallel>], iteration_bounds = array<i64: 1>, scalar_prefetch = 0 : i64, scratch_operands = 0 : i64, tpu.core_type = #tpu.core_type<tc>, window_params = [{transform_indices = @transform_0, window_bounds = array<i64: 32, 256>}, {pipeline_mode = #tpu.pipeline_mode<synchronous>, transform_indices = @transform_1, window_bounds = array<i64: 256, 128>}, {pipeline_mode = #tpu.pipeline_mode<synchronous>, transform_indices = @transform_2, window_bounds = array<i64: 1, 128>}, {transform_indices = @transform_3, window_bounds = array<i64: 32, 128>}]} {
    %c0 = arith.constant 0 : index
    %c0_0 = arith.constant 0 : index
    %0 = vector.load %arg1[%c0, %c0_0] : memref<32x256xbf16, #tpu.memory_space<vmem>>, vector<32x256xbf16>
    %c0_1 = arith.constant 0 : index
    %c0_2 = arith.constant 0 : index
    %1 = vector.load %arg2[%c0_1, %c0_2] : memref<256x128xbf16, #tpu.memory_space<vmem>>, vector<256x128xbf16>
    %cst = arith.constant dense<0.000000e+00> : vector<32x128xf32>
    %2 = tpu.matmul %0, %1, %cst {dimension_numbers = #tpu.dot_dimension_numbers<[1], [0], [0], [1], [0, 0, 1, 1], [], []>} : vector<32x256xbf16>, vector<256x128xbf16>, vector<32x128xf32> -> vector<32x128xf32>
    %c0_3 = arith.constant 0 : index
    %c0_4 = arith.constant 0 : index
    %3 = vector.load %arg3[%c0_3, %c0_4] : memref<1x128xf32, #tpu.memory_space<vmem>>, vector<1x128xf32>
    %4 = vector.broadcast %3 : vector<1x128xf32> to vector<32x128xf32>
    %5 = arith.addf %2, %4 : vector<32x128xf32>
    %cst_5 = arith.constant 0.000000e+00 : f32
    %6 = vector.broadcast %cst_5 : f32 to vector<32x128xf32>
    %7 = arith.maximumf %5, %6 : vector<32x128xf32>
    %8 = arith.truncf %7 : vector<32x128xf32> to vector<32x128xbf16>
    %c0_6 = arith.constant 0 : index
    %c0_7 = arith.constant 0 : index
    %9 = vector.load %arg4[%c0_6, %c0_7] : memref<32x128xbf16, #tpu.memory_space<vmem>>, vector<32x128xbf16>
    tpu.vector_store %arg4[%c0_6, %c0_7], %8 {strides = array<i32>} : memref<32x128xbf16, #tpu.memory_space<vmem>>, vector<32x128xbf16>,
    return
  }
  func.func @transform_0(%arg0: i32) -> (i32, i32) {
    %c0_i32 = arith.constant 0 : i32
    %c0_i32_0 = arith.constant 0 : i32
    return %arg0, %c0_i32 : i32, i32
  }
  func.func @transform_1(%arg0: i32) -> (i32, i32) {
    %c0_i32 = arith.constant 0 : i32
    %c0_i32_0 = arith.constant 0 : i32
    %c0_i32_1 = arith.constant 0 : i32
    return %c0_i32, %c0_i32_0 : i32, i32
  }
  func.func @transform_2(%arg0: i32) -> (i32, i32) {
    %c0_i32 = arith.constant 0 : i32
    %c0_i32_0 = arith.constant 0 : i32
    %c0_i32_1 = arith.constant 0 : i32
    return %c0_i32, %c0_i32_0 : i32, i32
  }
  func.func @transform_3(%arg0: i32) -> (i32, i32) {
    %c0_i32 = arith.constant 0 : i32
    %c0_i32_0 = arith.constant 0 : i32
    return %arg0, %c0_i32 : i32, i32
  }
}

module attributes {stable_mosaic.version = 11 : i64} {
  func.func @_matmul_bias_act_kernel(%arg0: i32, %arg1: memref<2x128xbf16, #tpu.memory_space<vmem>>, %arg2: memref<128x128xbf16, #tpu.memory_space<vmem>>, %arg3: memref<1x128xf32, #tpu.memory_space<vmem>>, %arg4: memref<2x128xf32, #tpu.memory_space<vmem>>) attributes {dimension_semantics = [#tpu.dimension_semantics<parallel>], iteration_bounds = array<i64: 1>, scalar_prefetch = 0 : i64, scratch_operands = 0 : i64, tpu.core_type = #tpu.core_type<tc>, window_params = [{transform_indices = @transform_0, window_bounds = array<i64: 2, 128>}, {pipeline_mode = #tpu.pipeline_mode<synchronous>, transform_indices = @transform_1, window_bounds = array<i64: 128, 128>}, {pipeline_mode = #tpu.pipeline_mode<synchronous>, transform_indices = @transform_2, window_bounds = array<i64: 1, 128>}, {transform_indices = @transform_3, window_bounds = array<i64: 2, 128>}]} {
    %c0 = arith.constant 0 : index
    %c0_0 = arith.constant 0 : index
    %0 = vector.load %arg1[%c0, %c0_0] : memref<2x128xbf16, #tpu.memory_space<vmem>>, vector<2x128xbf16>
    %c0_1 = arith.constant 0 : index
    %c0_2 = arith.constant 0 : index
    %1 = vector.load %arg2[%c0_1, %c0_2] : memref<128x128xbf16, #tpu.memory_space<vmem>>, vector<128x128xbf16>
    %cst = arith.constant dense<0.000000e+00> : vector<2x128xf32>
    %2 = tpu.matmul %0, %1, %cst {dimension_numbers = #tpu.dot_dimension_numbers<[1], [0], [0], [1], [0, 0, 1, 1], [], []>} : vector<2x128xbf16>, vector<128x128xbf16>, vector<2x128xf32> -> vector<2x128xf32>
    %c0_3 = arith.constant 0 : index
    %c0_4 = arith.constant 0 : index
    %3 = vector.load %arg3[%c0_3, %c0_4] : memref<1x128xf32, #tpu.memory_space<vmem>>, vector<1x128xf32>
    %4 = vector.broadcast %3 : vector<1x128xf32> to vector<2x128xf32>
    %5 = arith.addf %2, %4 : vector<2x128xf32>
    %cst_5 = arith.constant 0.000000e+00 : f32
    %6 = vector.broadcast %cst_5 : f32 to vector<2x128xf32>
    %7 = arith.maximumf %5, %6 : vector<2x128xf32>
    %c0_6 = arith.constant 0 : index
    %c0_7 = arith.constant 0 : index
    %8 = vector.load %arg4[%c0_6, %c0_7] : memref<2x128xf32, #tpu.memory_space<vmem>>, vector<2x128xf32>
    tpu.vector_store %arg4[%c0_6, %c0_7], %7 {strides = array<i32>} : memref<2x128xf32, #tpu.memory_space<vmem>>, vector<2x128xf32>,
    return
  }
  func.func @transform_0(%arg0: i32) -> (i32, i32) {
    %c0_i32 = arith.constant 0 : i32
    %c0_i32_0 = arith.constant 0 : i32
    return %arg0, %c0_i32 : i32, i32
  }
  func.func @transform_1(%arg0: i32) -> (i32, i32) {
    %c0_i32 = arith.constant 0 : i32
    %c0_i32_0 = arith.constant 0 : i32
    %c0_i32_1 = arith.constant 0 : i32
    return %c0_i32, %c0_i32_0 : i32, i32
  }
  func.func @transform_2(%arg0: i32) -> (i32, i32) {
    %c0_i32 = arith.constant 0 : i32
    %c0_i32_0 = arith.constant 0 : i32
    %c0_i32_1 = arith.constant 0 : i32
    return %c0_i32, %c0_i32_0 : i32, i32
  }
  func.func @transform_3(%arg0: i32) -> (i32, i32) {
    %c0_i32 = arith.constant 0 : i32
    %c0_i32_0 = arith.constant 0 : i32
    return %arg0, %c0_i32 : i32, i32
  }
}

module attributes {stable_mosaic.version = 11 : i64} {
  func.func @_matmul_bias_act_kernel(%arg0: i32, %arg1: memref<2x512xbf16, #tpu.memory_space<vmem>>, %arg2: memref<512x128xbf16, #tpu.memory_space<vmem>>, %arg3: memref<1x128xf32, #tpu.memory_space<vmem>>, %arg4: memref<2x128xbf16, #tpu.memory_space<vmem>>) attributes {dimension_semantics = [#tpu.dimension_semantics<parallel>], iteration_bounds = array<i64: 1>, scalar_prefetch = 0 : i64, scratch_operands = 0 : i64, tpu.core_type = #tpu.core_type<tc>, window_params = [{transform_indices = @transform_0, window_bounds = array<i64: 2, 512>}, {pipeline_mode = #tpu.pipeline_mode<synchronous>, transform_indices = @transform_1, window_bounds = array<i64: 512, 128>}, {pipeline_mode = #tpu.pipeline_mode<synchronous>, transform_indices = @transform_2, window_bounds = array<i64: 1, 128>}, {transform_indices = @transform_3, window_bounds = array<i64: 2, 128>}]} {
    %c0 = arith.constant 0 : index
    %c0_0 = arith.constant 0 : index
    %0 = vector.load %arg1[%c0, %c0_0] : memref<2x512xbf16, #tpu.memory_space<vmem>>, vector<2x512xbf16>
    %c0_1 = arith.constant 0 : index
    %c0_2 = arith.constant 0 : index
    %1 = vector.load %arg2[%c0_1, %c0_2] : memref<512x128xbf16, #tpu.memory_space<vmem>>, vector<512x128xbf16>
    %cst = arith.constant dense<0.000000e+00> : vector<2x128xf32>
    %2 = tpu.matmul %0, %1, %cst {dimension_numbers = #tpu.dot_dimension_numbers<[1], [0], [0], [1], [0, 0, 1, 1], [], []>} : vector<2x512xbf16>, vector<512x128xbf16>, vector<2x128xf32> -> vector<2x128xf32>
    %c0_3 = arith.constant 0 : index
    %c0_4 = arith.constant 0 : index
    %3 = vector.load %arg3[%c0_3, %c0_4] : memref<1x128xf32, #tpu.memory_space<vmem>>, vector<1x128xf32>
    %4 = vector.broadcast %3 : vector<1x128xf32> to vector<2x128xf32>
    %5 = arith.addf %2, %4 : vector<2x128xf32>
    %cst_5 = arith.constant 0.000000e+00 : f32
    %6 = vector.broadcast %cst_5 : f32 to vector<2x128xf32>
    %7 = arith.maximumf %5, %6 : vector<2x128xf32>
    %8 = arith.truncf %7 : vector<2x128xf32> to vector<2x128xbf16>
    %c0_6 = arith.constant 0 : index
    %c0_7 = arith.constant 0 : index
    %9 = vector.load %arg4[%c0_6, %c0_7] : memref<2x128xbf16, #tpu.memory_space<vmem>>, vector<2x128xbf16>
    tpu.vector_store %arg4[%c0_6, %c0_7], %8 {strides = array<i32>} : memref<2x128xbf16, #tpu.memory_space<vmem>>, vector<2x128xbf16>,
    return
  }
  func.func @transform_0(%arg0: i32) -> (i32, i32) {
    %c0_i32 = arith.constant 0 : i32
    %c0_i32_0 = arith.constant 0 : i32
    return %arg0, %c0_i32 : i32, i32
  }
  func.func @transform_1(%arg0: i32) -> (i32, i32) {
    %c0_i32 = arith.constant 0 : i32
    %c0_i32_0 = arith.constant 0 : i32
    %c0_i32_1 = arith.constant 0 : i32
    return %c0_i32, %c0_i32_0 : i32, i32
  }
  func.func @transform_2(%arg0: i32) -> (i32, i32) {
    %c0_i32 = arith.constant 0 : i32
    %c0_i32_0 = arith.constant 0 : i32
    %c0_i32_1 = arith.constant 0 : i32
    return %c0_i32, %c0_i32_0 : i32, i32
  }
  func.func @transform_3(%arg0: i32) -> (i32, i32) {
    %c0_i32 = arith.constant 0 : i32
    %c0_i32_0 = arith.constant 0 : i32
    return %arg0, %c0_i32 : i32, i32
  }
}

</mosaic_0001>

<llo_original>
// kernel: conv_encoder_forward.5
$region0: #{conv_encoder_forward.5}
  #allocation0 [shape = 'u32[]', space=smem, size = 0x4, offset = 0x4, fixed_abs, tag = 'smem constant byte address 0x4 - core index']
  #allocation1 [shape = 'u32[144,128]{1,0:T(1,128)}', space=vmem, size = 0x12000, scoped, tag = 'internal scratch']
  %s0 = inlined_call_operand.vmem [shape: bf16[1058,64], index: 0, kind: input, shape index: {}]
  %s1 = inlined_call_operand.vmem [shape: bf16[64,128], index: 1, kind: input, shape index: {}]
  %s2 = inlined_call_operand.vmem [shape: f32[1,128], index: 2, kind: input, shape index: {}]
  %s3 = inlined_call_operand.vmem [shape: bf16[1058,128], index: 3, kind: output, shape index: {}]
  %s4 = sld [smem:[#allocation0]]
  $region89: #{conv_encoder_forward.5} parent=0
    _
  %s6 = ssub.s32 1, %s4
  %s7 = scalar_select 0, %s6, %s4
  $region1: #{conv_encoder_forward.5} parent=0
    #allocation2 [shape = 'u8[139264]{0}', space=vmem, size = 0x22000, scoped, tag = 'output window, operand 0']
    loop: start=0, step=1, limit=6
    $region2: #{conv_encoder_forward.5} parent=1 // loop_pre_header
      _
    $region3: #{conv_encoder_forward.5} parent=1 // loop_header
      %s9 = sphi 0, %s13
      %p10 = scmp.ge.s32.totalorder %s9, 6
      %s19 = sphi 0, %s21
      %s22 = sphi 0, %s19
      %s23 = sphi 0, %s22
      %s39 = sphi 0, %s23
      %s43 = sphi 0, %s43
      %s45 = sphi 0, %s43
      %s46 = sphi 0, %s45
      %s60 = sphi 0, %s46
      %s64 = sphi 0, %s64
      %s66 = sphi 0, %s64
      %s67 = sphi 0, %s66
      %s81 = sphi 0, %s67
      %s87 = sphi 0, %s89
      %s90 = sphi 0, %s87
      %s91 = sphi 0, %s90
      %s107 = sphi 0, %s91
    $region4: #{conv_encoder_forward.5} parent=1 // loop_header_branch
      %12 = sbr.rel (%p10) target = $region8
    $region5: #{conv_encoder_forward.5} parent=1 // loop_body
      %s14 = ssub.s32 %s9, 1
      %s15 = ssub.s32 %s9, 2
      %s16 = sadd.s32 %s9, 1
      %s17 = ssub.s32 %s9, %s16
      %p18 = scmp.eq.s32.totalorder %s17, 0
      %s20 = sadd.s32 %s19, 1
      %s21 = scalar_select %p18, %s19, %s20
      %p24 = pneg %p18
      %p25 = scmp.eq.s32.totalorder %s9, 3
      %p26 = por %p24, %p25
      %p27 = scmp.ne.s32.totalorder %s19, %s22
      %p28 = scmp.eq.s32.totalorder %s9, 0
      %p29 = por %p27, %p28
      %p30 = scmp.ne.s32.totalorder %s19, %s22
      %p31 = scmp.eq.s32.totalorder %s14, 3
      %p32 = por %p30, %p31
      %p33 = scmp.ne.s32.totalorder %s22, %s23
      %p34 = scmp.eq.s32.totalorder %s14, 0
      %p35 = por %p33, %p34
      %p36 = scmp.ne.s32.totalorder %s22, %s23
      %p37 = scmp.eq.s32.totalorder %s15, 3
      %p38 = por %p36, %p37
      %p40 = scmp.ne.s32.totalorder %s23, %s39
      %p41 = scmp.eq.s32.totalorder %s15, 0
      %p42 = por %p40, %p41
      %s44 = sadd.s32 %s43, 1
      %p47 = scmp.eq.s32.totalorder %s9, 3
      %p48 = scmp.ne.s32.totalorder %s43, %s45
      %p49 = scmp.eq.s32.totalorder %s9, 0
      %p50 = por %p48, %p49
      %p51 = scmp.ne.s32.totalorder %s43, %s45
      %p52 = scmp.eq.s32.totalorder %s14, 3
      %p53 = por %p51, %p52
      %p54 = scmp.ne.s32.totalorder %s45, %s46
      %p55 = scmp.eq.s32.totalorder %s14, 0
      %p56 = por %p54, %p55
      %p57 = scmp.ne.s32.totalorder %s45, %s46
      %p58 = scmp.eq.s32.totalorder %s15, 3
      %p59 = por %p57, %p58
      %p61 = scmp.ne.s32.totalorder %s46, %s60
      %p62 = scmp.eq.s32.totalorder %s15, 0
      %p63 = por %p61, %p62
      %s65 = sadd.s32 %s64, 1
      %p68 = scmp.eq.s32.totalorder %s9, 3
      %p69 = scmp.ne.s32.totalorder %s64, %s66
      %p70 = scmp.eq.s32.totalorder %s9, 0
      %p71 = por %p69, %p70
      %p72 = scmp.ne.s32.totalorder %s64, %s66
      %p73 = scmp.eq.s32.totalorder %s14, 3
      %p74 = por %p72, %p73
      %p75 = scmp.ne.s32.totalorder %s66, %s67
      %p76 = scmp.eq.s32.totalorder %s14, 0
      %p77 = por %p75, %p76
      %p78 = scmp.ne.s32.totalorder %s66, %s67
      %p79 = scmp.eq.s32.totalorder %s15, 3
      %p80 = por %p78, %p79
      %p82 = scmp.ne.s32.totalorder %s67, %s81
      %p83 = scmp.eq.s32.totalorder %s15, 0
      %p84 = por %p82, %p83
      %s85 = ssub.s32 %s9, %s16
      %p86 = scmp.eq.s32.totalorder %s85, 0
      %s88 = sadd.s32 %s87, 1
      %s89 = scalar_select %p86, %s87, %s88
      %p92 = pneg %p86
      %p93 = scmp.eq.s32.totalorder %s9, 3
      %p94 = por %p92, %p93
      %p95 = scmp.ne.s32.totalorder %s87, %s90
      %p96 = scmp.eq.s32.totalorder %s9, 0
      %p97 = por %p95, %p96
      %p98 = scmp.ne.s32.totalorder %s87, %s90
      %p99 = scmp.eq.s32.totalorder %s14, 3
      %p100 = por %p98, %p99
      %p101 = scmp.ne.s32.totalorder %s90, %s91
      %p102 = scmp.eq.s32.totalorder %s14, 0
      %p103 = por %p101, %p102
      %p104 = scmp.ne.s32.totalorder %s90, %s91
      %p105 = scmp.eq.s32.totalorder %s15, 3
      %p106 = por %p104, %p105
      %p108 = scmp.ne.s32.totalorder %s91, %s107
      %p109 = scmp.eq.s32.totalorder %s15, 0
      %p110 = por %p108, %p109
      %p111 = scmp.le.s32.totalorder 1, %s9
      %p112 = scmp.lt.s32.totalorder %s9, 5
      %p113 = pnand %p111, %p112
      %p114 = pneg %p113
      // Predicated region
      $region9: #{conv_encoder_forward.5} parent=5 // pred_check
        _
      $region10: #{conv_encoder_forward.5} parent=5 // pred_check_branch
        %116 = sbr.rel (%p113) target = $region12
      $region11: #{conv_encoder_forward.5} parent=5 // pred_region
        %s117 = ssub.s32 %s9, 1
        // Predicated region
        $region13: #{conv_encoder_forward.5} parent=11 // pred_check
          %p118 = pneg %p56
        $region14: #{conv_encoder_forward.5} parent=11 // pred_check_branch
          %120 = sbr.rel (%p118) target = $region16
        $region15: #{conv_encoder_forward.5} parent=11 // pred_region
          _
        $region16: #{conv_encoder_forward.5} parent=11 // pred_fallthru
          _
        // Predicated region
        $region17: #{conv_encoder_forward.5} parent=11 // pred_check
          %p121 = pneg %p77
        $region18: #{conv_encoder_forward.5} parent=11 // pred_check_branch
          %123 = sbr.rel (%p121) target = $region20
        $region19: #{conv_encoder_forward.5} parent=11 // pred_region
          _
        $region20: #{conv_encoder_forward.5} parent=11 // pred_fallthru
          _
      $region12: #{conv_encoder_forward.5} parent=5 // pred_fallthru
        _
      %p124 = scmp.lt.s32.totalorder %s9, 4
      // Predicated region
      $region21: #{conv_encoder_forward.5} parent=5 // pred_check
        %p125 = pneg %p124
      $region22: #{conv_encoder_forward.5} parent=5 // pred_check_branch
        %127 = sbr.rel (%p125) target = $region24
      $region23: #{conv_encoder_forward.5} parent=5 // pred_region
        // Predicated region
        $region25: #{conv_encoder_forward.5} parent=23 // pred_check
          %p128 = pneg %p29
        $region26: #{conv_encoder_forward.5} parent=23 // pred_check_branch
          %130 = sbr.rel (%p128) target = $region28
        $region27: #{conv_encoder_forward.5} parent=23 // pred_region
          %s131 = smul.u32 34, %s9
          %s132 = ssub.s32 133, %s131
          %p133 = scmp.lt.s32.totalorder %s132, 34
          %s134 = scalar_select %p133, %s132, 34
          %s135 = smul.u32 64, %s134
          %p136 = scmp.lt.s32.totalorder %s131, 132
          %s137 = scalar_select %p136, %s131, 132
          %s138 = smul.addr %s137, 4
          %s139 = scalar_lea.vmem %s0, %s138
          %s140 = smul.u32 34, %s9
          %s141 = ssub.s32 133, %s140
          %p142 = scmp.lt.s32.totalorder %s141, 34
          %s143 = scalar_select %p142, %s141, 34
          %s144 = smul.u32 64, %s143
        $region28: #{conv_encoder_forward.5} parent=23 // pred_fallthru
          _
      $region24: #{conv_encoder_forward.5} parent=5 // pred_fallthru
        _
      %p145 = scmp.le.s32.totalorder 1, %s9
      %p146 = scmp.lt.s32.totalorder %s9, 5
      %p147 = pnand %p145, %p146
      %p148 = pneg %p147
      // Predicated region
      $region29: #{conv_encoder_forward.5} parent=5 // pred_check
        _
      $region30: #{conv_encoder_forward.5} parent=5 // pred_check_branch
        %150 = sbr.rel (%p147) target = $region32
      $region31: #{conv_encoder_forward.5} parent=5 // pred_region
        %s151 = ssub.s32 %s9, 1
        %s152 = smul.u32 34, %s14
        %s153 = ssub.s32 133, %s152
        %p154 = scmp.lt.s32.totalorder %s153, 34
        %s155 = scalar_select %p154, %s153, 34
        %s156 = smul.u32 64, %s155
        %p157 = scmp.lt.s32.totalorder %s152, 132
        %s158 = scalar_select %p157, %s152, 132
        %s159 = smul.addr %s158, 4
        %s160 = scalar_lea.vmem %s0, %s159
        %p161 = pneg %p35
        %p162 = pneg %p32
        %p163 = pneg %p56
        %p164 = pneg %p53
        %p165 = pneg %p77
        %p166 = pneg %p74
        %p167 = pneg %p103
        %p168 = pneg %p100
        %s169 = sand.u32 %s90, 1
        %s170 = sand.u32 %s90, 1
        %s171 = smul.addr %s170, 136
        %s172 = scalar_lea.vmem [#allocation2], %s171
        %s173 = smul.u32 34, %s14
        %s174 = ssub.s32 133, %s173
        %p175 = scmp.lt.s32.totalorder %s174, 34
        %s176 = scalar_select %p175, %s174, 34
        %s177 = smul.u32 64, %s176
        %p178 = scmp.lt.s32.totalorder %s173, 132
        %s179 = scalar_select %p178, %s173, 132
        %s180 = smul.addr %s179, 4
        %s181 = scalar_lea.vmem %s0, %s180
        %s182 = smul.u32 34, %s14
        %s183 = ssub.s32 133, %s182
        %p184 = scmp.lt.s32.totalorder %s183, 34
        %s185 = scalar_select %p184, %s183, 34
        %s186 = smul.u32 64, %s185
        %s187 = smul.u32 34, %s14
        %s188 = ssub.s32 133, %s187
        %p189 = scmp.lt.s32.totalorder %s188, 34
        %s190 = scalar_select %p189, %s188, 34
        %s191 = smul.u32 64, %s190
        %v193 = vld [vmem:[%s181] sm:$0xf]
        %v194 = vld [vmem:[%s181 + $0x4] sm:$0xf]
        %v195 = vld [vmem:[%s181 + $0x8] sm:$0xf]
        %v196 = vld [vmem:[%s181 + $0xc] sm:$0xf]
        %v197 = vld [vmem:[%s181 + $0x10] sm:$0xf]
        %v198 = vld [vmem:[%s181 + $0x14] sm:$0xf]
        %v199 = vld [vmem:[%s181 + $0x18] sm:$0xf]
        %v200 = vld [vmem:[%s181 + $0x1c] sm:$0xf]
        %v201 = vld [vmem:[%s181 + $0x20] sm:$0xf]
        %v202 = vld [vmem:[%s181 + $0x24] sm:$0xf]
        %v203 = vld [vmem:[%s181 + $0x28] sm:$0xf]
        %v204 = vld [vmem:[%s181 + $0x2c] sm:$0xf]
        %v205 = vld [vmem:[%s181 + $0x30] sm:$0xf]
        %v206 = vld [vmem:[%s181 + $0x34] sm:$0xf]
        %v207 = vld [vmem:[%s181 + $0x38] sm:$0xf]
        %v208 = vld [vmem:[%s181 + $0x3c] sm:$0xf]
        %v209 = vld [vmem:[%s181 + $0x40] sm:$0xf]
        %v210 = vld [vmem:[%s181 + $0x44] sm:$0xf]
        %v211 = vld [vmem:[%s181 + $0x48] sm:$0xf]
        %v212 = vld [vmem:[%s181 + $0x4c] sm:$0xf]
        %v213 = vld [vmem:[%s181 + $0x50] sm:$0xf]
        %v214 = vld [vmem:[%s181 + $0x54] sm:$0xf]
        %v215 = vld [vmem:[%s181 + $0x58] sm:$0xf]
        %v216 = vld [vmem:[%s181 + $0x5c] sm:$0xf]
        %v217 = vld [vmem:[%s181 + $0x60] sm:$0xf]
        %v218 = vld [vmem:[%s181 + $0x64] sm:$0xf]
        %v219 = vld [vmem:[%s181 + $0x68] sm:$0xf]
        %v220 = vld [vmem:[%s181 + $0x6c] sm:$0xf]
        %v221 = vld [vmem:[%s181 + $0x70] sm:$0xf]
        %v222 = vld [vmem:[%s181 + $0x74] sm:$0xf]
        %v223 = vld [vmem:[%s181 + $0x78] sm:$0xf]
        %v224 = vld [vmem:[%s181 + $0x7c] sm:$0xf]
        %v225 = vld [vmem:[%s181 + $0x80] sm:$0xf]
        %v226 = vld [vmem:[%s181 + $0x84] sm:$0xf]
        %v227 = vld [vmem:[%s1] sm:$0xf]
        %v228 = vld [vmem:[%s1 + $0x4] sm:$0xf]
        %v229 = vld [vmem:[%s1 + $0x8] sm:$0xf]
        %v230 = vld [vmem:[%s1 + $0xc] sm:$0xf]
        %v231 = vld [vmem:[%s1 + $0x10] sm:$0xf]
        %v232 = vld [vmem:[%s1 + $0x14] sm:$0xf]
        %v233 = vld [vmem:[%s1 + $0x18] sm:$0xf]
        %v234 = vld [vmem:[%s1 + $0x1c] sm:$0xf]
        %v235 = vld [vmem:[%s2] sm:$0x1]
        %v237 = vlaneseq
        %v238 = vshrl.u32 %v237, 7
        %v239 = vsub.s32 0, %v238
        %v240 = vrot.slane %v235, %v239
        %v276 = vunpack.c.l.b16 %v193
        %v277 = vunpack.c.l.b16 %v194
        %v278 = vunpack.c.l.b16 %v195
        %v279 = vunpack.c.l.b16 %v196
        %v280 = vunpack.c.l.b16 %v197
        %v281 = vunpack.c.l.b16 %v198
        %v282 = vunpack.c.l.b16 %v199
        %v283 = vunpack.c.l.b16 %v200
        %v284 = vunpack.c.l.b16 %v201
        %v285 = vunpack.c.l.b16 %v202
        %v286 = vunpack.c.l.b16 %v203
        %v287 = vunpack.c.l.b16 %v204
        %v288 = vunpack.c.l.b16 %v205
        %v289 = vunpack.c.l.b16 %v206
        %v290 = vunpack.c.l.b16 %v207
        %v291 = vunpack.c.l.b16 %v208
        %v292 = vunpack.c.l.b16 %v209
        %v293 = vunpack.c.l.b16 %v210
        %v294 = vunpack.c.l.b16 %v211
        %v295 = vunpack.c.l.b16 %v212
        %v296 = vunpack.c.l.b16 %v213
        %v297 = vunpack.c.l.b16 %v214
        %v298 = vunpack.c.l.b16 %v215
        %v299 = vunpack.c.l.b16 %v216
        %v300 = vunpack.c.l.b16 %v217
        %v301 = vunpack.c.l.b16 %v218
        %v302 = vunpack.c.l.b16 %v219
        %v303 = vunpack.c.l.b16 %v220
        %v304 = vunpack.c.l.b16 %v221
        %v305 = vunpack.c.l.b16 %v222
        %v306 = vunpack.c.l.b16 %v223
        %v307 = vunpack.c.l.b16 %v224
        %v308 = vunpack.c.l.b16 %v225
        %v309 = vunpack.c.l.b16 %v226
        %v310 = vpack.c.b16 %v277, %v276
        %v311 = vpack.c.b16 %v279, %v278
        %v312 = vpack.c.b16 %v281, %v280
        %v313 = vpack.c.b16 %v283, %v282
        %v314 = vpack.c.b16 %v285, %v284
        %v315 = vpack.c.b16 %v287, %v286
        %v316 = vpack.c.b16 %v289, %v288
        %v317 = vpack.c.b16 %v291, %v290
        %v318 = vpack.c.b16 %v293, %v292
        %v319 = vpack.c.b16 %v295, %v294
        %v320 = vpack.c.b16 %v297, %v296
        %v321 = vpack.c.b16 %v299, %v298
        %v322 = vpack.c.b16 %v301, %v300
        %v323 = vpack.c.b16 %v303, %v302
        %v324 = vpack.c.b16 %v305, %v304
        %v325 = vpack.c.b16 %v307, %v306
        %v326 = vpack.c.b16 %v309, %v308
        %v335 = vunpack.c.l.b16 %v227
        %v336 = vunpack.c.l.b16 %v228
        %v337 = vunpack.c.l.b16 %v229
        %v338 = vunpack.c.l.b16 %v230
        %v339 = vunpack.c.l.b16 %v231
        %v340 = vunpack.c.l.b16 %v232
        %v341 = vunpack.c.l.b16 %v233
        %v342 = vunpack.c.l.b16 %v234
        %v343 = vpack.c.b16 %v336, %v335
        %v344 = vpack.c.b16 %v338, %v337
        %v345 = vpack.c.b16 %v340, %v339
        %v346 = vpack.c.b16 %v342, %v341
        %vm351 = vcmask 523264
        %v353 = vsel %vm351, %v310, 0
        %v356 = vsel %vm351, %v311, 0
        %v359 = vsel %vm351, %v312, 0
        %v362 = vsel %vm351, %v313, 0
        %v365 = vsel %vm351, %v314, 0
        %v368 = vsel %vm351, %v315, 0
        %v371 = vsel %vm351, %v316, 0
        %v374 = vsel %vm351, %v317, 0
        %v377 = vsel %vm351, %v318, 0
        %v380 = vsel %vm351, %v319, 0
        %v383 = vsel %vm351, %v320, 0
        %v386 = vsel %vm351, %v321, 0
        %v389 = vsel %vm351, %v322, 0
        %v392 = vsel %vm351, %v323, 0
        %v395 = vsel %vm351, %v324, 0
        %v398 = vsel %vm351, %v325, 0
        %v401 = vsel %vm351, %v326, 0
        %403 = vmatprep.subr.bf16.mxu0 0
        %404 = vmatpush1.bf16.msra.mxu0 %v343
        %405 = vmatprep.subr.bf16.mxu0 0
        %406 = vmatpush1.bf16.msra.mxu0 %v344
        %407 = vmatprep.subr.bf16.mxu0 0
        %408 = vmatpush1.bf16.msra.mxu0 %v345
        %409 = vmatprep.subr.bf16.mxu0 0
        %410 = vmatpush1.bf16.msra.mxu0 %v346
        %411 = vmatprep.subr.bf16.mxu0 0
        %412 = vmatpush1.bf16.msra.mxu0 0
        %413 = vmatprep.subr.bf16.mxu0 0
        %414 = vmatpush1.bf16.msra.mxu0 0
        %415 = vmatprep.subr.bf16.mxu0 0
        %416 = vmatpush1.bf16.msra.mxu0 0
        %417 = vmatprep.subr.bf16.mxu0 0
        %418 = vmatpush1.bf16.msra.mxu0 0
        %419 = vmatprep.subr.bf16.mxu0 0
        %420 = vmatpush1.bf16.msra.mxu0 0
        %421 = vmatprep.subr.bf16.mxu0 0
        %422 = vmatpush1.bf16.msra.mxu0 0
        %423 = vmatprep.subr.bf16.mxu0 0
        %424 = vmatpush1.bf16.msra.mxu0 0
        %425 = vmatprep.subr.bf16.mxu0 0
        %426 = vmatpush1.bf16.msra.mxu0 0
        %427 = vmatprep.subr.bf16.mxu0 0
        %428 = vmatpush1.bf16.msra.mxu0 0
        %429 = vmatprep.subr.bf16.mxu0 0
        %430 = vmatpush1.bf16.msra.mxu0 0
        %431 = vmatprep.subr.bf16.mxu0 0
        %432 = vmatpush1.bf16.msra.mxu0 0
        %433 = vmatprep.subr.bf16.mxu0 0
        %434 = vmatpush1.bf16.msra.mxu0 0
        %435 = vmatprep.mubr.bf16.mxu0 0
        %436 = vmatmul.mubr.bf16.gmra.mrb[0].mxu0 %v353
        %v437 = vpop.f32.mrb[0].mxu0
        %v438 = vadd.f32 %v240, %v437
        %v439 = vpop.f32.mrb[0].mxu0
        %v440 = vpop.f32.mrb[0].mxu0
        %v441 = vadd.f32 %v240, %v440
        %v442 = vpop.f32.mrb[0].mxu0
        %443 = vmatprep.mubr.bf16.mxu0 0
        %444 = vmatmul.mubr.bf16.gmra.mrb[0].mxu0 %v356
        %v445 = vpop.f32.mrb[0].mxu0
        %v446 = vadd.f32 %v240, %v445
        %v447 = vpop.f32.mrb[0].mxu0
        %v448 = vpop.f32.mrb[0].mxu0
        %v449 = vadd.f32 %v240, %v448
        %v450 = vpop.f32.mrb[0].mxu0
        %451 = vmatprep.mubr.bf16.mxu0 0
        %452 = vmatmul.mubr.bf16.gmra.mrb[0].mxu0 %v359
        %v453 = vpop.f32.mrb[0].mxu0
        %v454 = vadd.f32 %v240, %v453
        %v455 = vpop.f32.mrb[0].mxu0
        %v456 = vpop.f32.mrb[0].mxu0
        %v457 = vadd.f32 %v240, %v456
        %v458 = vpop.f32.mrb[0].mxu0
        %459 = vmatprep.mubr.bf16.mxu0 0
        %460 = vmatmul.mubr.bf16.gmra.mrb[0].mxu0 %v362
        %v461 = vpop.f32.mrb[0].mxu0
        %v462 = vadd.f32 %v240, %v461
        %v463 = vpop.f32.mrb[0].mxu0
        %v464 = vpop.f32.mrb[0].mxu0
        %v465 = vadd.f32 %v240, %v464
        %v466 = vpop.f32.mrb[0].mxu0
        %467 = vmatprep.mubr.bf16.mxu0 0
        %468 = vmatmul.mubr.bf16.gmra.mrb[0].mxu0 %v365
        %v469 = vpop.f32.mrb[0].mxu0
        %v470 = vadd.f32 %v240, %v469
        %v471 = vpop.f32.mrb[0].mxu0
        %v472 = vpop.f32.mrb[0].mxu0
        %v473 = vadd.f32 %v240, %v472
        %v474 = vpop.f32.mrb[0].mxu0
        %475 = vmatprep.mubr.bf16.mxu0 0
        %476 = vmatmul.mubr.bf16.gmra.mrb[0].mxu0 %v368
        %v477 = vpop.f32.mrb[0].mxu0
        %v478 = vadd.f32 %v240, %v477
        %v479 = vpop.f32.mrb[0].mxu0
        %v480 = vpop.f32.mrb[0].mxu0
        %v481 = vadd.f32 %v240, %v480
        %v482 = vpop.f32.mrb[0].mxu0
        %483 = vmatprep.mubr.bf16.mxu0 0
        %484 = vmatmul.mubr.bf16.gmra.mrb[0].mxu0 %v371
        %v485 = vpop.f32.mrb[0].mxu0
        %v486 = vadd.f32 %v240, %v485
        %v487 = vpop.f32.mrb[0].mxu0
        %v488 = vpop.f32.mrb[0].mxu0
        %v489 = vadd.f32 %v240, %v488
        %v490 = vpop.f32.mrb[0].mxu0
        %491 = vmatprep.mubr.bf16.mxu0 0
        %492 = vmatmul.mubr.bf16.gmra.mrb[0].mxu0 %v374
        %v493 = vpop.f32.mrb[0].mxu0
        %v494 = vadd.f32 %v240, %v493
        %v495 = vpop.f32.mrb[0].mxu0
        %v496 = vpop.f32.mrb[0].mxu0
        %v497 = vadd.f32 %v240, %v496
        %v498 = vpop.f32.mrb[0].mxu0
        %499 = vmatprep.mubr.bf16.mxu0 0
        %500 = vmatmul.mubr.bf16.gmra.mrb[0].mxu0 %v377
        %v501 = vpop.f32.mrb[0].mxu0
        %v502 = vadd.f32 %v240, %v501
        %v503 = vpop.f32.mrb[0].mxu0
        %v504 = vpop.f32.mrb[0].mxu0
        %v505 = vadd.f32 %v240, %v504
        %v506 = vpop.f32.mrb[0].mxu0
        %507 = vmatprep.mubr.bf16.mxu0 0
        %508 = vmatmul.mubr.bf16.gmra.mrb[0].mxu0 %v380
        %v509 = vpop.f32.mrb[0].mxu0
        %v510 = vadd.f32 %v240, %v509
        %v511 = vpop.f32.mrb[0].mxu0
        %v512 = vpop.f32.mrb[0].mxu0
        %v513 = vadd.f32 %v240, %v512
        %v514 = vpop.f32.mrb[0].mxu0
        %515 = vmatprep.mubr.bf16.mxu0 0
        %516 = vmatmul.mubr.bf16.gmra.mrb[0].mxu0 %v383
        %v517 = vpop.f32.mrb[0].mxu0
        %v518 = vadd.f32 %v240, %v517
        %v519 = vpop.f32.mrb[0].mxu0
        %v520 = vpop.f32.mrb[0].mxu0
        %v521 = vadd.f32 %v240, %v520
        %v522 = vpop.f32.mrb[0].mxu0
        %523 = vmatprep.mubr.bf16.mxu0 0
        %524 = vmatmul.mubr.bf16.gmra.mrb[0].mxu0 %v386
        %v525 = vpop.f32.mrb[0].mxu0
        %v526 = vadd.f32 %v240, %v525
        %v527 = vpop.f32.mrb[0].mxu0
        %v528 = vpop.f32.mrb[0].mxu0
        %v529 = vadd.f32 %v240, %v528
        %v530 = vpop.f32.mrb[0].mxu0
        %531 = vmatprep.mubr.bf16.mxu0 0
        %532 = vmatmul.mubr.bf16.gmra.mrb[0].mxu0 %v389
        %v533 = vpop.f32.mrb[0].mxu0
        %v534 = vadd.f32 %v240, %v533
        %v535 = vpop.f32.mrb[0].mxu0
        %v536 = vpop.f32.mrb[0].mxu0
        %v537 = vadd.f32 %v240, %v536
        %v538 = vpop.f32.mrb[0].mxu0
        %539 = vmatprep.mubr.bf16.mxu0 0
        %540 = vmatmul.mubr.bf16.gmra.mrb[0].mxu0 %v392
        %v541 = vpop.f32.mrb[0].mxu0
        %v542 = vadd.f32 %v240, %v541
        %v543 = vpop.f32.mrb[0].mxu0
        %v544 = vpop.f32.mrb[0].mxu0
        %v545 = vadd.f32 %v240, %v544
        %v546 = vpop.f32.mrb[0].mxu0
        %547 = vmatprep.mubr.bf16.mxu0 0
        %548 = vmatmul.mubr.bf16.gmra.mrb[0].mxu0 %v395
        %v549 = vpop.f32.mrb[0].mxu0
        %v550 = vadd.f32 %v240, %v549
        %v551 = vpop.f32.mrb[0].mxu0
        %v552 = vpop.f32.mrb[0].mxu0
        %v553 = vadd.f32 %v240, %v552
        %v554 = vpop.f32.mrb[0].mxu0
        %555 = vmatprep.mubr.bf16.mxu0 0
        %556 = vmatmul.mubr.bf16.gmra.mrb[0].mxu0 %v398
        %v557 = vpop.f32.mrb[0].mxu0
        %v558 = vadd.f32 %v240, %v557
        %v559 = vpop.f32.mrb[0].mxu0
        %v560 = vpop.f32.mrb[0].mxu0
        %v561 = vadd.f32 %v240, %v560
        %v562 = vpop.f32.mrb[0].mxu0
        %563 = vmatprep.mubr.bf16.mxu0 0
        %564 = vmatmul.mubr.bf16.gmra.mrb[0].mxu0 %v401
        %v565 = vpop.f32.mrb[0].mxu0
        %v566 = vadd.f32 %v240, %v565
        %v567 = vpop.f32.mrb[0].mxu0
        %v568 = vpop.f32.mrb[0].mxu0
        %v569 = vadd.f32 %v240, %v568
        %v570 = vpop.f32.mrb[0].mxu0
        %571 = vdwg.mxu0
        %v572 = vmax.f32 %v438, 0.0
        %v573 = vmax.f32 %v441, 0.0
        %v574 = vmax.f32 %v446, 0.0
        %v575 = vmax.f32 %v449, 0.0
        %v576 = vmax.f32 %v454, 0.0
        %v577 = vmax.f32 %v457, 0.0
        %v578 = vmax.f32 %v462, 0.0
        %v579 = vmax.f32 %v465, 0.0
        %v580 = vmax.f32 %v470, 0.0
        %v581 = vmax.f32 %v473, 0.0
        %v582 = vmax.f32 %v478, 0.0
        %v583 = vmax.f32 %v481, 0.0
        %v584 = vmax.f32 %v486, 0.0
        %v585 = vmax.f32 %v489, 0.0
        %v586 = vmax.f32 %v494, 0.0
        %v587 = vmax.f32 %v497, 0.0
        %v588 = vmax.f32 %v502, 0.0
        %v589 = vmax.f32 %v505, 0.0
        %v590 = vmax.f32 %v510, 0.0
        %v591 = vmax.f32 %v513, 0.0
        %v592 = vmax.f32 %v518, 0.0
        %v593 = vmax.f32 %v521, 0.0
        %v594 = vmax.f32 %v526, 0.0
        %v595 = vmax.f32 %v529, 0.0
        %v596 = vmax.f32 %v534, 0.0
        %v597 = vmax.f32 %v537, 0.0
        %v598 = vmax.f32 %v542, 0.0
        %v599 = vmax.f32 %v545, 0.0
        %v600 = vmax.f32 %v550, 0.0
        %v601 = vmax.f32 %v553, 0.0
        %v602 = vmax.f32 %v558, 0.0
        %v603 = vmax.f32 %v561, 0.0
        %v604 = vmax.f32 %v566, 0.0
        %v605 = vmax.f32 %v569, 0.0
        %v606 = vpack.c.bf16 %v573, %v572
        %v607 = vpack.c.bf16 %v575, %v574
        %v608 = vpack.c.bf16 %v577, %v576
        %v609 = vpack.c.bf16 %v579, %v578
        %v610 = vpack.c.bf16 %v581, %v580
        %v611 = vpack.c.bf16 %v583, %v582
        %v612 = vpack.c.bf16 %v585, %v584
        %v613 = vpack.c.bf16 %v587, %v586
        %v614 = vpack.c.bf16 %v589, %v588
        %v615 = vpack.c.bf16 %v591, %v590
        %v616 = vpack.c.bf16 %v593, %v592
        %v617 = vpack.c.bf16 %v595, %v594
        %v618 = vpack.c.bf16 %v597, %v596
        %v619 = vpack.c.bf16 %v599, %v598
        %v620 = vpack.c.bf16 %v601, %v600
        %v621 = vpack.c.bf16 %v603, %v602
        %v622 = vpack.c.bf16 %v605, %v604
        %v640 = vunpack.c.l.b16 %v606
        %v641 = vunpack.c.h.b16 %v606
        %v642 = vunpack.c.l.b16 %v607
        %v643 = vunpack.c.h.b16 %v607
        %v644 = vunpack.c.l.b16 %v608
        %v645 = vunpack.c.h.b16 %v608
        %v646 = vunpack.c.l.b16 %v609
        %v647 = vunpack.c.h.b16 %v609
        %v648 = vunpack.c.l.b16 %v610
        %v649 = vunpack.c.h.b16 %v610
        %v650 = vunpack.c.l.b16 %v611
        %v651 = vunpack.c.h.b16 %v611
        %v652 = vunpack.c.l.b16 %v612
        %v653 = vunpack.c.h.b16 %v612
        %v654 = vunpack.c.l.b16 %v613
        %v655 = vunpack.c.h.b16 %v613
        %v656 = vunpack.c.l.b16 %v614
        %v657 = vunpack.c.h.b16 %v614
        %v658 = vunpack.c.l.b16 %v615
        %v659 = vunpack.c.h.b16 %v615
        %v660 = vunpack.c.l.b16 %v616
        %v661 = vunpack.c.h.b16 %v616
        %v662 = vunpack.c.l.b16 %v617
        %v663 = vunpack.c.h.b16 %v617
        %v664 = vunpack.c.l.b16 %v618
        %v665 = vunpack.c.h.b16 %v618
        %v666 = vunpack.c.l.b16 %v619
        %v667 = vunpack.c.h.b16 %v619
        %v668 = vunpack.c.l.b16 %v620
        %v669 = vunpack.c.h.b16 %v620
        %v670 = vunpack.c.l.b16 %v621
        %v671 = vunpack.c.h.b16 %v621
        %v672 = vunpack.c.l.b16 %v622
        %v673 = vunpack.c.h.b16 %v622
        %v674 = vpack.c.b16 %v640, %v640
        %v675 = vpack.c.b16 %v641, %v641
        %v676 = vpack.c.b16 %v642, %v642
        %v677 = vpack.c.b16 %v643, %v643
        %v678 = vpack.c.b16 %v644, %v644
        %v679 = vpack.c.b16 %v645, %v645
        %v680 = vpack.c.b16 %v646, %v646
        %v681 = vpack.c.b16 %v647, %v647
        %v682 = vpack.c.b16 %v648, %v648
        %v683 = vpack.c.b16 %v649, %v649
        %v684 = vpack.c.b16 %v650, %v650
        %v685 = vpack.c.b16 %v651, %v651
        %v686 = vpack.c.b16 %v652, %v652
        %v687 = vpack.c.b16 %v653, %v653
        %v688 = vpack.c.b16 %v654, %v654
        %v689 = vpack.c.b16 %v655, %v655
        %v690 = vpack.c.b16 %v656, %v656
        %v691 = vpack.c.b16 %v657, %v657
        %v692 = vpack.c.b16 %v658, %v658
        %v693 = vpack.c.b16 %v659, %v659
        %v694 = vpack.c.b16 %v660, %v660
        %v695 = vpack.c.b16 %v661, %v661
        %v696 = vpack.c.b16 %v662, %v662
        %v697 = vpack.c.b16 %v663, %v663
        %v698 = vpack.c.b16 %v664, %v664
        %v699 = vpack.c.b16 %v665, %v665
        %v700 = vpack.c.b16 %v666, %v666
        %v701 = vpack.c.b16 %v667, %v667
        %v702 = vpack.c.b16 %v668, %v668
        %v703 = vpack.c.b16 %v669, %v669
        %v704 = vpack.c.b16 %v670, %v670
        %v705 = vpack.c.b16 %v671, %v671
        %v706 = vpack.c.b16 %v672, %v672
        %v707 = vpack.c.b16 %v673, %v673
        %742 = vst [vmem:[%s172] sm:$0xf] %v674
        %743 = vst [vmem:[%s172 + $0x4] sm:$0xf] %v675
        %744 = vst [vmem:[%s172 + $0x8] sm:$0xf] %v676
        %745 = vst [vmem:[%s172 + $0xc] sm:$0xf] %v677
        %746 = vst [vmem:[%s172 + $0x10] sm:$0xf] %v678
        %747 = vst [vmem:[%s172 + $0x14] sm:$0xf] %v679
        %748 = vst [vmem:[%s172 + $0x18] sm:$0xf] %v680
        %749 = vst [vmem:[%s172 + $0x1c] sm:$0xf] %v681
        %750 = vst [vmem:[%s172 + $0x20] sm:$0xf] %v682
        %751 = vst [vmem:[%s172 + $0x24] sm:$0xf] %v683
        %752 = vst [vmem:[%s172 + $0x28] sm:$0xf] %v684
        %753 = vst [vmem:[%s172 + $0x2c] sm:$0xf] %v685
        %754 = vst [vmem:[%s172 + $0x30] sm:$0xf] %v686
        %755 = vst [vmem:[%s172 + $0x34] sm:$0xf] %v687
        %756 = vst [vmem:[%s172 + $0x38] sm:$0xf] %v688
        %757 = vst [vmem:[%s172 + $0x3c] sm:$0xf] %v689
        %758 = vst [vmem:[%s172 + $0x40] sm:$0xf] %v690
        %759 = vst [vmem:[%s172 + $0x44] sm:$0xf] %v691
        %760 = vst [vmem:[%s172 + $0x48] sm:$0xf] %v692
        %761 = vst [vmem:[%s172 + $0x4c] sm:$0xf] %v693
        %762 = vst [vmem:[%s172 + $0x50] sm:$0xf] %v694
        %763 = vst [vmem:[%s172 + $0x54] sm:$0xf] %v695
        %764 = vst [vmem:[%s172 + $0x58] sm:$0xf] %v696
        %765 = vst [vmem:[%s172 + $0x5c] sm:$0xf] %v697
        %766 = vst [vmem:[%s172 + $0x60] sm:$0xf] %v698
        %767 = vst [vmem:[%s172 + $0x64] sm:$0xf] %v699
        %768 = vst [vmem:[%s172 + $0x68] sm:$0xf] %v700
        %769 = vst [vmem:[%s172 + $0x6c] sm:$0xf] %v701
        %770 = vst [vmem:[%s172 + $0x70] sm:$0xf] %v702
        %771 = vst [vmem:[%s172 + $0x74] sm:$0xf] %v703
        %772 = vst [vmem:[%s172 + $0x78] sm:$0xf] %v704
        %773 = vst [vmem:[%s172 + $0x7c] sm:$0xf] %v705
        %774 = vst [vmem:[%s172 + $0x80] sm:$0xf] %v706
        %775 = vst [vmem:[%s172 + $0x84] sm:$0xf] %v707
        %s776 = sand.u32 %s90, 1
        %s777 = sand.u32 %s90, 1
        %s778 = smul.addr %s777, 136
        %s779 = scalar_lea.vmem [#allocation2], %s778
        // Predicated region
        $region33: #{conv_encoder_forward.5} parent=31 // pred_check
          %p780 = pneg %p100
        $region34: #{conv_encoder_forward.5} parent=31 // pred_check_branch
          %782 = sbr.rel (%p780) target = $region36
        $region35: #{conv_encoder_forward.5} parent=31 // pred_region
          %s783 = smul.u32 34, %s14
          %s784 = ssub.s32 133, %s783
          %p785 = scmp.lt.s32.totalorder %s784, 34
          %s786 = scalar_select %p785, %s784, 34
          %s787 = smul.u32 64, %s786
          %p788 = scmp.ne.s32.totalorder 0, %s787
          %s789 = smul.addr %s783, 4
          %s790 = scalar_lea.vmem %s3, %s789
          // Predicated region
          $region37: #{conv_encoder_forward.5} parent=35 // pred_check
            %p791 = pneg %p788
          $region38: #{conv_encoder_forward.5} parent=35 // pred_check_branch
            %793 = sbr.rel (%p791) target = $region40
          $region39: #{conv_encoder_forward.5} parent=35 // pred_region
            // Predicated region
            $region41: #{conv_encoder_forward.5} parent=39 // pred_check
              _
            $region42: #{conv_encoder_forward.5} parent=39 // pred_check_branch
              %795 = sbr.rel target = $region44
            $region43: #{conv_encoder_forward.5} parent=39 // pred_region
              // Predicated region
              $region63: #{conv_encoder_forward.5} parent=43 // pred_check
                _
              $region64: #{conv_encoder_forward.5} parent=43 // pred_check_branch
                %911 = sbr.rel (0) target = $region66
              $region65: #{conv_encoder_forward.5} parent=43 // pred_region
                %s913 = sdiv.u32.pop %s786, 34
                %s914 = srem.u32.pop %s786, 34
                // While loop
                $region67: #{conv_encoder_forward.5} parent=65 // loop_pre_header
                  _
                $region68: #{conv_encoder_forward.5} parent=65 // loop_header
                  %s916 = sphi 0, %s918
                  %p917 = scmp.ge.s32.totalorder %s916, %s913
                  %s921 = sphi 0, %s994
                  %s922 = sphi %s779, %s997
                  %s923 = sphi %s790, %s998
                $region69: #{conv_encoder_forward.5} parent=65 // loop_header_branch
                  %920 = sbr.rel (%p917) target = $region73
                $region70: #{conv_encoder_forward.5} parent=65 // loop_body
                  %v924 = vld [vmem:[%s922] sm:$0xf]
                  %925 = vst [vmem:[%s923] sm:$0xf] %v924
                  %v926 = vld [vmem:[%s922 + $0x4] sm:$0xf]
                  %927 = vst [vmem:[%s923 + $0x4] sm:$0xf] %v926
                  %v928 = vld [vmem:[%s922 + $0x8] sm:$0xf]
                  %929 = vst [vmem:[%s923 + $0x8] sm:$0xf] %v928
                  %v930 = vld [vmem:[%s922 + $0xc] sm:$0xf]
                  %931 = vst [vmem:[%s923 + $0xc] sm:$0xf] %v930
                  %v932 = vld [vmem:[%s922 + $0x10] sm:$0xf]
                  %933 = vst [vmem:[%s923 + $0x10] sm:$0xf] %v932
                  %v934 = vld [vmem:[%s922 + $0x14] sm:$0xf]
                  %935 = vst [vmem:[%s923 + $0x14] sm:$0xf] %v934
                  %v936 = vld [vmem:[%s922 + $0x18] sm:$0xf]
                  %937 = vst [vmem:[%s923 + $0x18] sm:$0xf] %v936
                  %v938 = vld [vmem:[%s922 + $0x1c] sm:$0xf]
                  %939 = vst [vmem:[%s923 + $0x1c] sm:$0xf] %v938
                  %v940 = vld [vmem:[%s922 + $0x20] sm:$0xf]
                  %941 = vst [vmem:[%s923 + $0x20] sm:$0xf] %v940
                  %v942 = vld [vmem:[%s922 + $0x24] sm:$0xf]
                  %943 = vst [vmem:[%s923 + $0x24] sm:$0xf] %v942
                  %v944 = vld [vmem:[%s922 + $0x28] sm:$0xf]
                  %945 = vst [vmem:[%s923 + $0x28] sm:$0xf] %v944
                  %v946 = vld [vmem:[%s922 + $0x2c] sm:$0xf]
                  %947 = vst [vmem:[%s923 + $0x2c] sm:$0xf] %v946
                  %v948 = vld [vmem:[%s922 + $0x30] sm:$0xf]
                  %949 = vst [vmem:[%s923 + $0x30] sm:$0xf] %v948
                  %v950 = vld [vmem:[%s922 + $0x34] sm:$0xf]
                  %951 = vst [vmem:[%s923 + $0x34] sm:$0xf] %v950
                  %v952 = vld [vmem:[%s922 + $0x38] sm:$0xf]
                  %953 = vst [vmem:[%s923 + $0x38] sm:$0xf] %v952
                  %v954 = vld [vmem:[%s922 + $0x3c] sm:$0xf]
                  %955 = vst [vmem:[%s923 + $0x3c] sm:$0xf] %v954
                  %v956 = vld [vmem:[%s922 + $0x40] sm:$0xf]
                  %957 = vst [vmem:[%s923 + $0x40] sm:$0xf] %v956
                  %v958 = vld [vmem:[%s922 + $0x44] sm:$0xf]
                  %959 = vst [vmem:[%s923 + $0x44] sm:$0xf] %v958
                  %v960 = vld [vmem:[%s922 + $0x48] sm:$0xf]
                  %961 = vst [vmem:[%s923 + $0x48] sm:$0xf] %v960
                  %v962 = vld [vmem:[%s922 + $0x4c] sm:$0xf]
                  %963 = vst [vmem:[%s923 + $0x4c] sm:$0xf] %v962
                  %v964 = vld [vmem:[%s922 + $0x50] sm:$0xf]
                  %965 = vst [vmem:[%s923 + $0x50] sm:$0xf] %v964
                  %v966 = vld [vmem:[%s922 + $0x54] sm:$0xf]
                  %967 = vst [vmem:[%s923 + $0x54] sm:$0xf] %v966
                  %v968 = vld [vmem:[%s922 + $0x58] sm:$0xf]
                  %969 = vst [vmem:[%s923 + $0x58] sm:$0xf] %v968
                  %v970 = vld [vmem:[%s922 + $0x5c] sm:$0xf]
                  %971 = vst [vmem:[%s923 + $0x5c] sm:$0xf] %v970
                  %v972 = vld [vmem:[%s922 + $0x60] sm:$0xf]
                  %973 = vst [vmem:[%s923 + $0x60] sm:$0xf] %v972
                  %v974 = vld [vmem:[%s922 + $0x64] sm:$0xf]
                  %975 = vst [vmem:[%s923 + $0x64] sm:$0xf] %v974
                  %v976 = vld [vmem:[%s922 + $0x68] sm:$0xf]
                  %977 = vst [vmem:[%s923 + $0x68] sm:$0xf] %v976
                  %v978 = vld [vmem:[%s922 + $0x6c] sm:$0xf]
                  %979 = vst [vmem:[%s923 + $0x6c] sm:$0xf] %v978
                  %v980 = vld [vmem:[%s922 + $0x70] sm:$0xf]
                  %981 = vst [vmem:[%s923 + $0x70] sm:$0xf] %v980
                  %v982 = vld [vmem:[%s922 + $0x74] sm:$0xf]
                  %983 = vst [vmem:[%s923 + $0x74] sm:$0xf] %v982
                  %v984 = vld [vmem:[%s922 + $0x78] sm:$0xf]
                  %985 = vst [vmem:[%s923 + $0x78] sm:$0xf] %v984
                  %v986 = vld [vmem:[%s922 + $0x7c] sm:$0xf]
                  %987 = vst [vmem:[%s923 + $0x7c] sm:$0xf] %v986
                  %v988 = vld [vmem:[%s922 + $0x80] sm:$0xf]
                  %989 = vst [vmem:[%s923 + $0x80] sm:$0xf] %v988
                  %v990 = vld [vmem:[%s922 + $0x84] sm:$0xf]
                  %991 = vst [vmem:[%s923 + $0x84] sm:$0xf] %v990
                  %s992 = sadd.s32 1, %s921
                  %p993 = scmp.ge.s32.totalorder %s992, %s913
                  %s994 = scalar_select %p993, 0, %s992
                  %s995 = smul.u32 %s994, 136
                  %s996 = smul.u32 %s994, 136
                  %s997 = scalar_lea.vmem %s779, %s995 [#allocation2]
                  %s998 = scalar_lea.vmem %s790, %s996
                $region71: #{conv_encoder_forward.5} parent=65 // loop_footer
                  %s918 = sadd.s32 %s916, 1
                $region72: #{conv_encoder_forward.5} parent=65 // loop_footer_branch
                  %915 = sbr.rel target = $region68
                $region73: #{conv_encoder_forward.5} parent=65 // loop_exit
                  _
                %s999 = sdiv.u32.pop %s786, 34
                %s1000 = srem.u32.pop %s786, 34
                %s1001 = smul.u32 %s999, 34
                %s1002 = smul.u32 4, %s1001
                %s1003 = scalar_lea.vmem %s779, %s1002 [#allocation2]
                %s1004 = smul.u32 4, %s1001
                %s1005 = scalar_lea.vmem %s790, %s1004
                // While loop
                $region74: #{conv_encoder_forward.5} parent=65 // loop_pre_header
                  _
                $region75: #{conv_encoder_forward.5} parent=65 // loop_header
                  %s1007 = sphi 0, %s1009
                  %p1008 = scmp.ge.s32.totalorder %s1007, %s1000
                  %s1012 = sphi 0, %s1019
                  %s1013 = sphi %s1003, %s1022
                  %s1014 = sphi %s1005, %s1023
                $region76: #{conv_encoder_forward.5} parent=65 // loop_header_branch
                  %1011 = sbr.rel (%p1008) target = $region80
                $region77: #{conv_encoder_forward.5} parent=65 // loop_body
                  %v1015 = vld [vmem:[%s1013] sm:$0xf]
                  %1016 = vst [vmem:[%s1014] sm:$0xf] %v1015
                  %s1017 = sadd.s32 1, %s1012
                  %p1018 = scmp.ge.s32.totalorder %s1017, %s1000
                  %s1019 = scalar_select %p1018, 0, %s1017
                  %s1020 = smul.u32 %s1019, 4
                  %s1021 = smul.u32 %s1019, 4
                  %s1022 = scalar_lea.vmem %s1003, %s1020 [#allocation2]
                  %s1023 = scalar_lea.vmem %s1005, %s1021
                $region78: #{conv_encoder_forward.5} parent=65 // loop_footer
                  %s1009 = sadd.s32 %s1007, 1
                $region79: #{conv_encoder_forward.5} parent=65 // loop_footer_branch
                  %1006 = sbr.rel target = $region75
                $region80: #{conv_encoder_forward.5} parent=65 // loop_exit
                  _
              $region66: #{conv_encoder_forward.5} parent=43 // pred_fallthru
                _
            $region44: #{conv_encoder_forward.5} parent=39 // pred_fallthru
              _
            // Predicated region
            $region45: #{conv_encoder_forward.5} parent=39 // pred_check
              _
            $region46: #{conv_encoder_forward.5} parent=39 // pred_check_branch
              %797 = sbr.rel (0) target = $region48
            $region47: #{conv_encoder_forward.5} parent=39 // pred_region
              %s799 = sdiv.u32.pop %s786, 34
              %s800 = srem.u32.pop %s786, 34
              // While loop
              $region49: #{conv_encoder_forward.5} parent=47 // loop_pre_header
                _
              $region50: #{conv_encoder_forward.5} parent=47 // loop_header
                %s802 = sphi 0, %s804
                %p803 = scmp.ge.s32.totalorder %s802, %s799
                %s807 = sphi 0, %s880
                %s808 = sphi %s779, %s883
                %s809 = sphi %s790, %s884
              $region51: #{conv_encoder_forward.5} parent=47 // loop_header_branch
                %806 = sbr.rel (%p803) target = $region55
              $region52: #{conv_encoder_forward.5} parent=47 // loop_body
                %v810 = vld [vmem:[%s808] sm:$0xf]
                %811 = vst [vmem:[%s809] sm:$0xf] %v810
                %v812 = vld [vmem:[%s808 + $0x4] sm:$0xf]
                %813 = vst [vmem:[%s809 + $0x4] sm:$0xf] %v812
                %v814 = vld [vmem:[%s808 + $0x8] sm:$0xf]
                %815 = vst [vmem:[%s809 + $0x8] sm:$0xf] %v814
                %v816 = vld [vmem:[%s808 + $0xc] sm:$0xf]
                %817 = vst [vmem:[%s809 + $0xc] sm:$0xf] %v816
                %v818 = vld [vmem:[%s808 + $0x10] sm:$0xf]
                %819 = vst [vmem:[%s809 + $0x10] sm:$0xf] %v818
                %v820 = vld [vmem:[%s808 + $0x14] sm:$0xf]
                %821 = vst [vmem:[%s809 + $0x14] sm:$0xf] %v820
                %v822 = vld [vmem:[%s808 + $0x18] sm:$0xf]
                %823 = vst [vmem:[%s809 + $0x18] sm:$0xf] %v822
                %v824 = vld [vmem:[%s808 + $0x1c] sm:$0xf]
                %825 = vst [vmem:[%s809 + $0x1c] sm:$0xf] %v824
                %v826 = vld [vmem:[%s808 + $0x20] sm:$0xf]
                %827 = vst [vmem:[%s809 + $0x20] sm:$0xf] %v826
                %v828 = vld [vmem:[%s808 + $0x24] sm:$0xf]
                %829 = vst [vmem:[%s809 + $0x24] sm:$0xf] %v828
                %v830 = vld [vmem:[%s808 + $0x28] sm:$0xf]
                %831 = vst [vmem:[%s809 + $0x28] sm:$0xf] %v830
                %v832 = vld [vmem:[%s808 + $0x2c] sm:$0xf]
                %833 = vst [vmem:[%s809 + $0x2c] sm:$0xf] %v832
                %v834 = vld [vmem:[%s808 + $0x30] sm:$0xf]
                %835 = vst [vmem:[%s809 + $0x30] sm:$0xf] %v834
                %v836 = vld [vmem:[%s808 + $0x34] sm:$0xf]
                %837 = vst [vmem:[%s809 + $0x34] sm:$0xf] %v836
                %v838 = vld [vmem:[%s808 + $0x38] sm:$0xf]
                %839 = vst [vmem:[%s809 + $0x38] sm:$0xf] %v838
                %v840 = vld [vmem:[%s808 + $0x3c] sm:$0xf]
                %841 = vst [vmem:[%s809 + $0x3c] sm:$0xf] %v840
                %v842 = vld [vmem:[%s808 + $0x40] sm:$0xf]
                %843 = vst [vmem:[%s809 + $0x40] sm:$0xf] %v842
                %v844 = vld [vmem:[%s808 + $0x44] sm:$0xf]
                %845 = vst [vmem:[%s809 + $0x44] sm:$0xf] %v844
                %v846 = vld [vmem:[%s808 + $0x48] sm:$0xf]
                %847 = vst [vmem:[%s809 + $0x48] sm:$0xf] %v846
                %v848 = vld [vmem:[%s808 + $0x4c] sm:$0xf]
                %849 = vst [vmem:[%s809 + $0x4c] sm:$0xf] %v848
                %v850 = vld [vmem:[%s808 + $0x50] sm:$0xf]
                %851 = vst [vmem:[%s809 + $0x50] sm:$0xf] %v850
                %v852 = vld [vmem:[%s808 + $0x54] sm:$0xf]
                %853 = vst [vmem:[%s809 + $0x54] sm:$0xf] %v852
                %v854 = vld [vmem:[%s808 + $0x58] sm:$0xf]
                %855 = vst [vmem:[%s809 + $0x58] sm:$0xf] %v854
                %v856 = vld [vmem:[%s808 + $0x5c] sm:$0xf]
                %857 = vst [vmem:[%s809 + $0x5c] sm:$0xf] %v856
                %v858 = vld [vmem:[%s808 + $0x60] sm:$0xf]
                %859 = vst [vmem:[%s809 + $0x60] sm:$0xf] %v858
                %v860 = vld [vmem:[%s808 + $0x64] sm:$0xf]
                %861 = vst [vmem:[%s809 + $0x64] sm:$0xf] %v860
                %v862 = vld [vmem:[%s808 + $0x68] sm:$0xf]
                %863 = vst [vmem:[%s809 + $0x68] sm:$0xf] %v862
                %v864 = vld [vmem:[%s808 + $0x6c] sm:$0xf]
                %865 = vst [vmem:[%s809 + $0x6c] sm:$0xf] %v864
                %v866 = vld [vmem:[%s808 + $0x70] sm:$0xf]
                %867 = vst [vmem:[%s809 + $0x70] sm:$0xf] %v866
                %v868 = vld [vmem:[%s808 + $0x74] sm:$0xf]
                %869 = vst [vmem:[%s809 + $0x74] sm:$0xf] %v868
                %v870 = vld [vmem:[%s808 + $0x78] sm:$0xf]
                %871 = vst [vmem:[%s809 + $0x78] sm:$0xf] %v870
                %v872 = vld [vmem:[%s808 + $0x7c] sm:$0xf]
                %873 = vst [vmem:[%s809 + $0x7c] sm:$0xf] %v872
                %v874 = vld [vmem:[%s808 + $0x80] sm:$0xf]
                %875 = vst [vmem:[%s809 + $0x80] sm:$0xf] %v874
                %v876 = vld [vmem:[%s808 + $0x84] sm:$0xf]
                %877 = vst [vmem:[%s809 + $0x84] sm:$0xf] %v876
                %s878 = sadd.s32 1, %s807
                %p879 = scmp.ge.s32.totalorder %s878, %s799
                %s880 = scalar_select %p879, 0, %s878
                %s881 = smul.u32 %s880, 136
                %s882 = smul.u32 %s880, 136
                %s883 = scalar_lea.vmem %s779, %s881 [#allocation2]
                %s884 = scalar_lea.vmem %s790, %s882
              $region53: #{conv_encoder_forward.5} parent=47 // loop_footer
                %s804 = sadd.s32 %s802, 1
              $region54: #{conv_encoder_forward.5} parent=47 // loop_footer_branch
                %801 = sbr.rel target = $region50
              $region55: #{conv_encoder_forward.5} parent=47 // loop_exit
                _
              %s885 = sdiv.u32.pop %s786, 34
              %s886 = srem.u32.pop %s786, 34
              %s887 = smul.u32 %s885, 34
              %s888 = smul.u32 4, %s887
              %s889 = scalar_lea.vmem %s779, %s888 [#allocation2]
              %s890 = smul.u32 4, %s887
              %s891 = scalar_lea.vmem %s790, %s890
              // While loop
              $region56: #{conv_encoder_forward.5} parent=47 // loop_pre_header
                _
              $region57: #{conv_encoder_forward.5} parent=47 // loop_header
                %s893 = sphi 0, %s895
                %p894 = scmp.ge.s32.totalorder %s893, %s886
                %s898 = sphi 0, %s905
                %s899 = sphi %s889, %s908
                %s900 = sphi %s891, %s909
              $region58: #{conv_encoder_forward.5} parent=47 // loop_header_branch
                %897 = sbr.rel (%p894) target = $region62
              $region59: #{conv_encoder_forward.5} parent=47 // loop_body
                %v901 = vld [vmem:[%s899] sm:$0xf]
                %902 = vst [vmem:[%s900] sm:$0xf] %v901
                %s903 = sadd.s32 1, %s898
                %p904 = scmp.ge.s32.totalorder %s903, %s886
                %s905 = scalar_select %p904, 0, %s903
                %s906 = smul.u32 %s905, 4
                %s907 = smul.u32 %s905, 4
                %s908 = scalar_lea.vmem %s889, %s906 [#allocation2]
                %s909 = scalar_lea.vmem %s891, %s907
              $region60: #{conv_encoder_forward.5} parent=47 // loop_footer
                %s895 = sadd.s32 %s893, 1
              $region61: #{conv_encoder_forward.5} parent=47 // loop_footer_branch
                %892 = sbr.rel target = $region57
              $region62: #{conv_encoder_forward.5} parent=47 // loop_exit
                _
            $region48: #{conv_encoder_forward.5} parent=39 // pred_fallthru
              _
          $region40: #{conv_encoder_forward.5} parent=35 // pred_fallthru
            _
          %1024 = vnop
        $region36: #{conv_encoder_forward.5} parent=31 // pred_fallthru
          _
      $region32: #{conv_encoder_forward.5} parent=5 // pred_fallthru
        _
      %p1025 = scmp.le.s32.totalorder 2, %s9
      // Predicated region
      $region81: #{conv_encoder_forward.5} parent=5 // pred_check
        %p1026 = pneg %p1025
      $region82: #{conv_encoder_forward.5} parent=5 // pred_check_branch
        %1028 = sbr.rel (%p1026) target = $region84
      $region83: #{conv_encoder_forward.5} parent=5 // pred_region
        %s1029 = ssub.s32 %s9, 2
        // Predicated region
        $region85: #{conv_encoder_forward.5} parent=83 // pred_check
          %p1030 = pneg %p106
        $region86: #{conv_encoder_forward.5} parent=83 // pred_check_branch
          %1032 = sbr.rel (%p1030) target = $region88
        $region87: #{conv_encoder_forward.5} parent=83 // pred_region
          %s1033 = sand.u32 %s91, 1
          %s1034 = sand.u32 %s91, 1
          %s1035 = smul.addr %s1034, 136
          %s1036 = scalar_lea.vmem [#allocation2], %s1035
        $region88: #{conv_encoder_forward.5} parent=83 // pred_fallthru
          _
      $region84: #{conv_encoder_forward.5} parent=5 // pred_fallthru
        _
    $region6: #{conv_encoder_forward.5} parent=1 // loop_footer
      %s13 = sadd.s32 1, %s9
    $region7: #{conv_encoder_forward.5} parent=1 // loop_footer_branch
      %8 = sbr.rel target = $region3
    $region8: #{conv_encoder_forward.5} parent=1 // loop_exit
      _

// kernel: conv_encoder_forward.6
$region0: #{conv_encoder_forward.6}
  #allocation0 [shape = 'u32[]', space=smem, size = 0x4, offset = 0x4, fixed_abs, tag = 'smem constant byte address 0x4 - core index']
  #allocation1 [shape = 'u32[144,128]{1,0:T(1,128)}', space=vmem, size = 0x12000, scoped, tag = 'internal scratch']
  %s0 = inlined_call_operand.vmem [shape: bf16[200,128], index: 0, kind: input, shape index: {}]
  %s1 = inlined_call_operand.vmem [shape: bf16[128,128], index: 1, kind: input, shape index: {}]
  %s2 = inlined_call_operand.vmem [shape: f32[1,128], index: 2, kind: input, shape index: {}]
  %s3 = inlined_call_operand.vmem [shape: bf16[200,128], index: 3, kind: output, shape index: {}]
  %s4 = sld [smem:[#allocation0]]
  $region22: #{conv_encoder_forward.6} parent=0
    _
  %s6 = ssub.s32 1, %s4
  %s7 = scalar_select 0, %s6, %s4
  // Predicated region
  $region2: #{conv_encoder_forward.6} parent=0 // pred_check
    _
  $region3: #{conv_encoder_forward.6} parent=0 // pred_check_branch
    %9 = sbr.rel (0) target = $region5
  $region4: #{conv_encoder_forward.6} parent=0 // pred_region
    _
  $region5: #{conv_encoder_forward.6} parent=0 // pred_fallthru
    _
  // Predicated region
  $region6: #{conv_encoder_forward.6} parent=0 // pred_check
    _
  $region7: #{conv_encoder_forward.6} parent=0 // pred_check_branch
    %11 = sbr.rel (0) target = $region9
  $region8: #{conv_encoder_forward.6} parent=0 // pred_region
    _
  $region9: #{conv_encoder_forward.6} parent=0 // pred_fallthru
    _
  // Predicated region
  $region10: #{conv_encoder_forward.6} parent=0 // pred_check
    _
  $region11: #{conv_encoder_forward.6} parent=0 // pred_check_branch
    %13 = sbr.rel (0) target = $region13
  $region12: #{conv_encoder_forward.6} parent=0 // pred_region
    _
  $region13: #{conv_encoder_forward.6} parent=0 // pred_fallthru
    _
  %v15 = vld [vmem:[%s0] sm:$0xf]
  %v16 = vld [vmem:[%s0 + $0x4] sm:$0xf]
  %v17 = vld [vmem:[%s0 + $0x8] sm:$0xf]
  %v18 = vld [vmem:[%s0 + $0xc] sm:$0xf]
  %v19 = vld [vmem:[%s0 + $0x10] sm:$0xf]
  %v20 = vld [vmem:[%s0 + $0x14] sm:$0xf]
  %v21 = vld [vmem:[%s0 + $0x18] sm:$0xf]
  %v22 = vld [vmem:[%s0 + $0x1c] sm:$0xf]
  %v23 = vld [vmem:[%s0 + $0x20] sm:$0xf]
  %v24 = vld [vmem:[%s0 + $0x24] sm:$0xf]
  %v25 = vld [vmem:[%s0 + $0x28] sm:$0xf]
  %v26 = vld [vmem:[%s0 + $0x2c] sm:$0xf]
  %v27 = vld [vmem:[%s0 + $0x30] sm:$0xf]
  %v28 = vld [vmem:[%s0 + $0x34] sm:$0xf]
  %v29 = vld [vmem:[%s0 + $0x38] sm:$0xf]
  %v30 = vld [vmem:[%s0 + $0x3c] sm:$0xf]
  %v31 = vld [vmem:[%s0 + $0x40] sm:$0xf]
  %v32 = vld [vmem:[%s0 + $0x44] sm:$0xf]
  %v33 = vld [vmem:[%s0 + $0x48] sm:$0xf]
  %v34 = vld [vmem:[%s0 + $0x4c] sm:$0xf]
  %v35 = vld [vmem:[%s0 + $0x50] sm:$0xf]
  %v36 = vld [vmem:[%s0 + $0x54] sm:$0xf]
  %v37 = vld [vmem:[%s0 + $0x58] sm:$0xf]
  %v38 = vld [vmem:[%s0 + $0x5c] sm:$0xf]
  %v39 = vld [vmem:[%s0 + $0x60] sm:$0xf]
  %v40 = vld [vmem:[%s1] sm:$0xf]
  %v41 = vld [vmem:[%s1 + $0x4] sm:$0xf]
  %v42 = vld [vmem:[%s1 + $0x8] sm:$0xf]
  %v43 = vld [vmem:[%s1 + $0xc] sm:$0xf]
  %v44 = vld [vmem:[%s1 + $0x10] sm:$0xf]
  %v45 = vld [vmem:[%s1 + $0x14] sm:$0xf]
  %v46 = vld [vmem:[%s1 + $0x18] sm:$0xf]
  %v47 = vld [vmem:[%s1 + $0x1c] sm:$0xf]
  %v48 = vld [vmem:[%s1 + $0x20] sm:$0xf]
  %v49 = vld [vmem:[%s1 + $0x24] sm:$0xf]
  %v50 = vld [vmem:[%s1 + $0x28] sm:$0xf]
  %v51 = vld [vmem:[%s1 + $0x2c] sm:$0xf]
  %v52 = vld [vmem:[%s1 + $0x30] sm:$0xf]
  %v53 = vld [vmem:[%s1 + $0x34] sm:$0xf]
  %v54 = vld [vmem:[%s1 + $0x38] sm:$0xf]
  %v55 = vld [vmem:[%s1 + $0x3c] sm:$0xf]
  %v56 = vld [vmem:[%s2] sm:$0x1]
  %v58 = vlaneseq
  %v59 = vshrl.u32 %v58, 7
  %v60 = vsub.s32 0, %v59
  %v61 = vrot.slane %v56, %v60
  %v88 = vunpack.c.l.b16 %v15
  %v89 = vunpack.c.l.b16 %v16
  %v90 = vunpack.c.l.b16 %v17
  %v91 = vunpack.c.l.b16 %v18
  %v92 = vunpack.c.l.b16 %v19
  %v93 = vunpack.c.l.b16 %v20
  %v94 = vunpack.c.l.b16 %v21
  %v95 = vunpack.c.l.b16 %v22
  %v96 = vunpack.c.l.b16 %v23
  %v97 = vunpack.c.l.b16 %v24
  %v98 = vunpack.c.l.b16 %v25
  %v99 = vunpack.c.l.b16 %v26
  %v100 = vunpack.c.l.b16 %v27
  %v101 = vunpack.c.l.b16 %v28
  %v102 = vunpack.c.l.b16 %v29
  %v103 = vunpack.c.l.b16 %v30
  %v104 = vunpack.c.l.b16 %v31
  %v105 = vunpack.c.l.b16 %v32
  %v106 = vunpack.c.l.b16 %v33
  %v107 = vunpack.c.l.b16 %v34
  %v108 = vunpack.c.l.b16 %v35
  %v109 = vunpack.c.l.b16 %v36
  %v110 = vunpack.c.l.b16 %v37
  %v111 = vunpack.c.l.b16 %v38
  %v112 = vunpack.c.l.b16 %v39
  %v113 = vpack.c.b16 %v89, %v88
  %v114 = vpack.c.b16 %v91, %v90
  %v115 = vpack.c.b16 %v93, %v92
  %v116 = vpack.c.b16 %v95, %v94
  %v117 = vpack.c.b16 %v97, %v96
  %v118 = vpack.c.b16 %v99, %v98
  %v119 = vpack.c.b16 %v101, %v100
  %v120 = vpack.c.b16 %v103, %v102
  %v121 = vpack.c.b16 %v105, %v104
  %v122 = vpack.c.b16 %v107, %v106
  %v123 = vpack.c.b16 %v109, %v108
  %v124 = vpack.c.b16 %v111, %v110
  %v125 = vpack.c.b16 %v112, %v112
  %v155 = vunpack.c.l.b16 %v40
  %v156 = vunpack.c.l.b16 %v41
  %v157 = vunpack.c.l.b16 %v42
  %v158 = vunpack.c.l.b16 %v43
  %v159 = vunpack.c.l.b16 %v44
  %v160 = vunpack.c.l.b16 %v45
  %v161 = vunpack.c.l.b16 %v46
  %v162 = vunpack.c.l.b16 %v47
  %v163 = vunpack.c.l.b16 %v48
  %v164 = vunpack.c.l.b16 %v49
  %v165 = vunpack.c.l.b16 %v50
  %v166 = vunpack.c.l.b16 %v51
  %v167 = vunpack.c.l.b16 %v52
  %v168 = vunpack.c.l.b16 %v53
  %v169 = vunpack.c.l.b16 %v54
  %v170 = vunpack.c.l.b16 %v55
  %v171 = vpack.c.b16 %v156, %v155
  %v172 = vpack.c.b16 %v158, %v157
  %v173 = vpack.c.b16 %v160, %v159
  %v174 = vpack.c.b16 %v162, %v161
  %v175 = vpack.c.b16 %v164, %v163
  %v176 = vpack.c.b16 %v166, %v165
  %v177 = vpack.c.b16 %v168, %v167
  %v178 = vpack.c.b16 %v170, %v169
  %187 = vmatprep.subr.bf16.mxu0 0
  %188 = vmatpush1.bf16.msra.mxu0 %v171
  %189 = vmatprep.subr.bf16.mxu0 0
  %190 = vmatpush1.bf16.msra.mxu0 %v172
  %191 = vmatprep.subr.bf16.mxu0 0
  %192 = vmatpush1.bf16.msra.mxu0 %v173
  %193 = vmatprep.subr.bf16.mxu0 0
  %194 = vmatpush1.bf16.msra.mxu0 %v174
  %195 = vmatprep.subr.bf16.mxu0 0
  %196 = vmatpush1.bf16.msra.mxu0 %v175
  %197 = vmatprep.subr.bf16.mxu0 0
  %198 = vmatpush1.bf16.msra.mxu0 %v176
  %199 = vmatprep.subr.bf16.mxu0 0
  %200 = vmatpush1.bf16.msra.mxu0 %v177
  %201 = vmatprep.subr.bf16.mxu0 0
  %202 = vmatpush1.bf16.msra.mxu0 %v178
  %203 = vmatprep.subr.bf16.mxu0 0
  %204 = vmatpush1.bf16.msra.mxu0 0
  %205 = vmatprep.subr.bf16.mxu0 0
  %206 = vmatpush1.bf16.msra.mxu0 0
  %207 = vmatprep.subr.bf16.mxu0 0
  %208 = vmatpush1.bf16.msra.mxu0 0
  %209 = vmatprep.subr.bf16.mxu0 0
  %210 = vmatpush1.bf16.msra.mxu0 0
  %211 = vmatprep.subr.bf16.mxu0 0
  %212 = vmatpush1.bf16.msra.mxu0 0
  %213 = vmatprep.subr.bf16.mxu0 0
  %214 = vmatpush1.bf16.msra.mxu0 0
  %215 = vmatprep.subr.bf16.mxu0 0
  %216 = vmatpush1.bf16.msra.mxu0 0
  %217 = vmatprep.subr.bf16.mxu0 0
  %218 = vmatpush1.bf16.msra.mxu0 0
  %219 = vmatprep.mubr.bf16.mxu0 0
  %220 = vmatmul.mubr.bf16.gmra.mrb[0].mxu0 %v113
  %v221 = vpop.f32.mrb[0].mxu0
  %v222 = vadd.f32 %v61, %v221
  %v223 = vpop.f32.mrb[0].mxu0
  %v224 = vpop.f32.mrb[0].mxu0
  %v225 = vadd.f32 %v61, %v224
  %v226 = vpop.f32.mrb[0].mxu0
  %227 = vmatprep.mubr.bf16.mxu0 0
  %228 = vmatmul.mubr.bf16.gmra.mrb[0].mxu0 %v114
  %v229 = vpop.f32.mrb[0].mxu0
  %v230 = vadd.f32 %v61, %v229
  %v231 = vpop.f32.mrb[0].mxu0
  %v232 = vpop.f32.mrb[0].mxu0
  %v233 = vadd.f32 %v61, %v232
  %v234 = vpop.f32.mrb[0].mxu0
  %235 = vmatprep.mubr.bf16.mxu0 0
  %236 = vmatmul.mubr.bf16.gmra.mrb[0].mxu0 %v115
  %v237 = vpop.f32.mrb[0].mxu0
  %v238 = vadd.f32 %v61, %v237
  %v239 = vpop.f32.mrb[0].mxu0
  %v240 = vpop.f32.mrb[0].mxu0
  %v241 = vadd.f32 %v61, %v240
  %v242 = vpop.f32.mrb[0].mxu0
  %243 = vmatprep.mubr.bf16.mxu0 0
  %244 = vmatmul.mubr.bf16.gmra.mrb[0].mxu0 %v116
  %v245 = vpop.f32.mrb[0].mxu0
  %v246 = vadd.f32 %v61, %v245
  %v247 = vpop.f32.mrb[0].mxu0
  %v248 = vpop.f32.mrb[0].mxu0
  %v249 = vadd.f32 %v61, %v248
  %v250 = vpop.f32.mrb[0].mxu0
  %251 = vmatprep.mubr.bf16.mxu0 0
  %252 = vmatmul.mubr.bf16.gmra.mrb[0].mxu0 %v117
  %v253 = vpop.f32.mrb[0].mxu0
  %v254 = vadd.f32 %v61, %v253
  %v255 = vpop.f32.mrb[0].mxu0
  %v256 = vpop.f32.mrb[0].mxu0
  %v257 = vadd.f32 %v61, %v256
  %v258 = vpop.f32.mrb[0].mxu0
  %259 = vmatprep.mubr.bf16.mxu0 0
  %260 = vmatmul.mubr.bf16.gmra.mrb[0].mxu0 %v118
  %v261 = vpop.f32.mrb[0].mxu0
  %v262 = vadd.f32 %v61, %v261
  %v263 = vpop.f32.mrb[0].mxu0
  %v264 = vpop.f32.mrb[0].mxu0
  %v265 = vadd.f32 %v61, %v264
  %v266 = vpop.f32.mrb[0].mxu0
  %267 = vmatprep.mubr.bf16.mxu0 0
  %268 = vmatmul.mubr.bf16.gmra.mrb[0].mxu0 %v119
  %v269 = vpop.f32.mrb[0].mxu0
  %v270 = vadd.f32 %v61, %v269
  %v271 = vpop.f32.mrb[0].mxu0
  %v272 = vpop.f32.mrb[0].mxu0
  %v273 = vadd.f32 %v61, %v272
  %v274 = vpop.f32.mrb[0].mxu0
  %275 = vmatprep.mubr.bf16.mxu0 0
  %276 = vmatmul.mubr.bf16.gmra.mrb[0].mxu0 %v120
  %v277 = vpop.f32.mrb[0].mxu0
  %v278 = vadd.f32 %v61, %v277
  %v279 = vpop.f32.mrb[0].mxu0
  %v280 = vpop.f32.mrb[0].mxu0
  %v281 = vadd.f32 %v61, %v280
  %v282 = vpop.f32.mrb[0].mxu0
  %283 = vmatprep.mubr.bf16.mxu0 0
  %284 = vmatmul.mubr.bf16.gmra.mrb[0].mxu0 %v121
  %v285 = vpop.f32.mrb[0].mxu0
  %v286 = vadd.f32 %v61, %v285
  %v287 = vpop.f32.mrb[0].mxu0
  %v288 = vpop.f32.mrb[0].mxu0
  %v289 = vadd.f32 %v61, %v288
  %v290 = vpop.f32.mrb[0].mxu0
  %291 = vmatprep.mubr.bf16.mxu0 0
  %292 = vmatmul.mubr.bf16.gmra.mrb[0].mxu0 %v122
  %v293 = vpop.f32.mrb[0].mxu0
  %v294 = vadd.f32 %v61, %v293
  %v295 = vpop.f32.mrb[0].mxu0
  %v296 = vpop.f32.mrb[0].mxu0
  %v297 = vadd.f32 %v61, %v296
  %v298 = vpop.f32.mrb[0].mxu0
  %299 = vmatprep.mubr.bf16.mxu0 0
  %300 = vmatmul.mubr.bf16.gmra.mrb[0].mxu0 %v123
  %v301 = vpop.f32.mrb[0].mxu0
  %v302 = vadd.f32 %v61, %v301
  %v303 = vpop.f32.mrb[0].mxu0
  %v304 = vpop.f32.mrb[0].mxu0
  %v305 = vadd.f32 %v61, %v304
  %v306 = vpop.f32.mrb[0].mxu0
  %307 = vmatprep.mubr.bf16.mxu0 0
  %308 = vmatmul.mubr.bf16.gmra.mrb[0].mxu0 %v124
  %v309 = vpop.f32.mrb[0].mxu0
  %v310 = vadd.f32 %v61, %v309
  %v311 = vpop.f32.mrb[0].mxu0
  %v312 = vpop.f32.mrb[0].mxu0
  %v313 = vadd.f32 %v61, %v312
  %v314 = vpop.f32.mrb[0].mxu0
  %315 = vmatprep.mubr.bf16.mxu0 0
  %316 = vmatmul.mubr.bf16.gmra.mrb[0].mxu0 %v125
  %v317 = vpop.f32.mrb[0].mxu0
  %v318 = vadd.f32 %v61, %v317
  %v319 = vpop.f32.mrb[0].mxu0
  %v320 = vpop.f32.mrb[0].mxu0
  %v321 = vpop.f32.mrb[0].mxu0
  %322 = vdwg.mxu0
  %v323 = vmax.f32 %v222, 0.0
  %v324 = vmax.f32 %v225, 0.0
  %v325 = vmax.f32 %v230, 0.0
  %v326 = vmax.f32 %v233, 0.0
  %v327 = vmax.f32 %v238, 0.0
  %v328 = vmax.f32 %v241, 0.0
  %v329 = vmax.f32 %v246, 0.0
  %v330 = vmax.f32 %v249, 0.0
  %v331 = vmax.f32 %v254, 0.0
  %v332 = vmax.f32 %v257, 0.0
  %v333 = vmax.f32 %v262, 0.0
  %v334 = vmax.f32 %v265, 0.0
  %v335 = vmax.f32 %v270, 0.0
  %v336 = vmax.f32 %v273, 0.0
  %v337 = vmax.f32 %v278, 0.0
  %v338 = vmax.f32 %v281, 0.0
  %v339 = vmax.f32 %v286, 0.0
  %v340 = vmax.f32 %v289, 0.0
  %v341 = vmax.f32 %v294, 0.0
  %v342 = vmax.f32 %v297, 0.0
  %v343 = vmax.f32 %v302, 0.0
  %v344 = vmax.f32 %v305, 0.0
  %v345 = vmax.f32 %v310, 0.0
  %v346 = vmax.f32 %v313, 0.0
  %v347 = vmax.f32 %v318, 0.0
  %v348 = vpack.c.bf16 %v324, %v323
  %v349 = vpack.c.bf16 %v326, %v325
  %v350 = vpack.c.bf16 %v328, %v327
  %v351 = vpack.c.bf16 %v330, %v329
  %v352 = vpack.c.bf16 %v332, %v331
  %v353 = vpack.c.bf16 %v334, %v333
  %v354 = vpack.c.bf16 %v336, %v335
  %v355 = vpack.c.bf16 %v338, %v337
  %v356 = vpack.c.bf16 %v340, %v339
  %v357 = vpack.c.bf16 %v342, %v341
  %v358 = vpack.c.bf16 %v344, %v343
  %v359 = vpack.c.bf16 %v346, %v345
  %v360 = vpack.c.bf16 %v347, %v347
  %v374 = vunpack.c.l.b16 %v348
  %v375 = vunpack.c.h.b16 %v348
  %v376 = vunpack.c.l.b16 %v349
  %v377 = vunpack.c.h.b16 %v349
  %v378 = vunpack.c.l.b16 %v350
  %v379 = vunpack.c.h.b16 %v350
  %v380 = vunpack.c.l.b16 %v351
  %v381 = vunpack.c.h.b16 %v351
  %v382 = vunpack.c.l.b16 %v352
  %v383 = vunpack.c.h.b16 %v352
  %v384 = vunpack.c.l.b16 %v353
  %v385 = vunpack.c.h.b16 %v353
  %v386 = vunpack.c.l.b16 %v354
  %v387 = vunpack.c.h.b16 %v354
  %v388 = vunpack.c.l.b16 %v355
  %v389 = vunpack.c.h.b16 %v355
  %v390 = vunpack.c.l.b16 %v356
  %v391 = vunpack.c.h.b16 %v356
  %v392 = vunpack.c.l.b16 %v357
  %v393 = vunpack.c.h.b16 %v357
  %v394 = vunpack.c.l.b16 %v358
  %v395 = vunpack.c.h.b16 %v358
  %v396 = vunpack.c.l.b16 %v359
  %v397 = vunpack.c.h.b16 %v359
  %v398 = vunpack.c.l.b16 %v360
  %v399 = vpack.c.b16 %v374, %v374
  %v400 = vpack.c.b16 %v375, %v375
  %v401 = vpack.c.b16 %v376, %v376
  %v402 = vpack.c.b16 %v377, %v377
  %v403 = vpack.c.b16 %v378, %v378
  %v404 = vpack.c.b16 %v379, %v379
  %v405 = vpack.c.b16 %v380, %v380
  %v406 = vpack.c.b16 %v381, %v381
  %v407 = vpack.c.b16 %v382, %v382
  %v408 = vpack.c.b16 %v383, %v383
  %v409 = vpack.c.b16 %v384, %v384
  %v410 = vpack.c.b16 %v385, %v385
  %v411 = vpack.c.b16 %v386, %v386
  %v412 = vpack.c.b16 %v387, %v387
  %v413 = vpack.c.b16 %v388, %v388
  %v414 = vpack.c.b16 %v389, %v389
  %v415 = vpack.c.b16 %v390, %v390
  %v416 = vpack.c.b16 %v391, %v391
  %v417 = vpack.c.b16 %v392, %v392
  %v418 = vpack.c.b16 %v393, %v393
  %v419 = vpack.c.b16 %v394, %v394
  %v420 = vpack.c.b16 %v395, %v395
  %v421 = vpack.c.b16 %v396, %v396
  %v422 = vpack.c.b16 %v397, %v397
  %v423 = vpack.c.b16 %v398, %v398
  %449 = vst [vmem:[%s3] sm:$0xf] %v399
  %450 = vst [vmem:[%s3 + $0x4] sm:$0xf] %v400
  %451 = vst [vmem:[%s3 + $0x8] sm:$0xf] %v401
  %452 = vst [vmem:[%s3 + $0xc] sm:$0xf] %v402
  %453 = vst [vmem:[%s3 + $0x10] sm:$0xf] %v403
  %454 = vst [vmem:[%s3 + $0x14] sm:$0xf] %v404
  %455 = vst [vmem:[%s3 + $0x18] sm:$0xf] %v405
  %456 = vst [vmem:[%s3 + $0x1c] sm:$0xf] %v406
  %457 = vst [vmem:[%s3 + $0x20] sm:$0xf] %v407
  %458 = vst [vmem:[%s3 + $0x24] sm:$0xf] %v408
  %459 = vst [vmem:[%s3 + $0x28] sm:$0xf] %v409
  %460 = vst [vmem:[%s3 + $0x2c] sm:$0xf] %v410
  %461 = vst [vmem:[%s3 + $0x30] sm:$0xf] %v411
  %462 = vst [vmem:[%s3 + $0x34] sm:$0xf] %v412
  %463 = vst [vmem:[%s3 + $0x38] sm:$0xf] %v413
  %464 = vst [vmem:[%s3 + $0x3c] sm:$0xf] %v414
  %465 = vst [vmem:[%s3 + $0x40] sm:$0xf] %v415
  %466 = vst [vmem:[%s3 + $0x44] sm:$0xf] %v416
  %467 = vst [vmem:[%s3 + $0x48] sm:$0xf] %v417
  %468 = vst [vmem:[%s3 + $0x4c] sm:$0xf] %v418
  %469 = vst [vmem:[%s3 + $0x50] sm:$0xf] %v419
  %470 = vst [vmem:[%s3 + $0x54] sm:$0xf] %v420
  %471 = vst [vmem:[%s3 + $0x58] sm:$0xf] %v421
  %472 = vst [vmem:[%s3 + $0x5c] sm:$0xf] %v422
  %473 = vst [vmem:[%s3 + $0x60] sm:$0xf] %v423
  // Predicated region
  $region14: #{conv_encoder_forward.6} parent=0 // pred_check
    _
  $region15: #{conv_encoder_forward.6} parent=0 // pred_check_branch
    %475 = sbr.rel (0) target = $region17
  $region16: #{conv_encoder_forward.6} parent=0 // pred_region
    _
  $region17: #{conv_encoder_forward.6} parent=0 // pred_fallthru
    _
  // Predicated region
  $region18: #{conv_encoder_forward.6} parent=0 // pred_check
    _
  $region19: #{conv_encoder_forward.6} parent=0 // pred_check_branch
    %477 = sbr.rel (0) target = $region21
  $region20: #{conv_encoder_forward.6} parent=0 // pred_region
    _
  $region21: #{conv_encoder_forward.6} parent=0 // pred_fallthru
    _

// kernel: conv_encoder_forward.7
$region0: #{conv_encoder_forward.7}
  #allocation0 [shape = 'u32[]', space=smem, size = 0x4, offset = 0x4, fixed_abs, tag = 'smem constant byte address 0x4 - core index']
  #allocation1 [shape = 'u32[144,128]{1,0:T(1,128)}', space=vmem, size = 0x12000, scoped, tag = 'internal scratch']
  %s0 = inlined_call_operand.vmem [shape: bf16[32,256], index: 0, kind: input, shape index: {}]
  %s1 = inlined_call_operand.vmem [shape: bf16[256,128], index: 1, kind: input, shape index: {}]
  %s2 = inlined_call_operand.vmem [shape: f32[1,128], index: 2, kind: input, shape index: {}]
  %s3 = inlined_call_operand.vmem [shape: bf16[32,128], index: 3, kind: output, shape index: {}]
  %s4 = sld [smem:[#allocation0]]
  $region22: #{conv_encoder_forward.7} parent=0
    _
  %s6 = ssub.s32 1, %s4
  %s7 = scalar_select 0, %s6, %s4
  // Predicated region
  $region2: #{conv_encoder_forward.7} parent=0 // pred_check
    _
  $region3: #{conv_encoder_forward.7} parent=0 // pred_check_branch
    %9 = sbr.rel (0) target = $region5
  $region4: #{conv_encoder_forward.7} parent=0 // pred_region
    _
  $region5: #{conv_encoder_forward.7} parent=0 // pred_fallthru
    _
  // Predicated region
  $region6: #{conv_encoder_forward.7} parent=0 // pred_check
    _
  $region7: #{conv_encoder_forward.7} parent=0 // pred_check_branch
    %11 = sbr.rel (0) target = $region9
  $region8: #{conv_encoder_forward.7} parent=0 // pred_region
    _
  $region9: #{conv_encoder_forward.7} parent=0 // pred_fallthru
    _
  // Predicated region
  $region10: #{conv_encoder_forward.7} parent=0 // pred_check
    _
  $region11: #{conv_encoder_forward.7} parent=0 // pred_check_branch
    %13 = sbr.rel (0) target = $region13
  $region12: #{conv_encoder_forward.7} parent=0 // pred_region
    _
  $region13: #{conv_encoder_forward.7} parent=0 // pred_fallthru
    _
  %v15 = vld [vmem:[%s0] sm:$0xff]
  %v16 = vld [vmem:[%s0 + $0x8] sm:$0xff]
  %v17 = vld [vmem:[%s0 + $0x10] sm:$0xff]
  %v18 = vld [vmem:[%s0 + $0x18] sm:$0xff]
  %v19 = vld [vmem:[%s1] sm:$0xf]
  %v20 = vld [vmem:[%s1 + $0x4] sm:$0xf]
  %v21 = vld [vmem:[%s1 + $0x8] sm:$0xf]
  %v22 = vld [vmem:[%s1 + $0xc] sm:$0xf]
  %v23 = vld [vmem:[%s1 + $0x10] sm:$0xf]
  %v24 = vld [vmem:[%s1 + $0x14] sm:$0xf]
  %v25 = vld [vmem:[%s1 + $0x18] sm:$0xf]
  %v26 = vld [vmem:[%s1 + $0x1c] sm:$0xf]
  %v27 = vld [vmem:[%s1 + $0x20] sm:$0xf]
  %v28 = vld [vmem:[%s1 + $0x24] sm:$0xf]
  %v29 = vld [vmem:[%s1 + $0x28] sm:$0xf]
  %v30 = vld [vmem:[%s1 + $0x2c] sm:$0xf]
  %v31 = vld [vmem:[%s1 + $0x30] sm:$0xf]
  %v32 = vld [vmem:[%s1 + $0x34] sm:$0xf]
  %v33 = vld [vmem:[%s1 + $0x38] sm:$0xf]
  %v34 = vld [vmem:[%s1 + $0x3c] sm:$0xf]
  %v35 = vld [vmem:[%s1 + $0x40] sm:$0xf]
  %v36 = vld [vmem:[%s1 + $0x44] sm:$0xf]
  %v37 = vld [vmem:[%s1 + $0x48] sm:$0xf]
  %v38 = vld [vmem:[%s1 + $0x4c] sm:$0xf]
  %v39 = vld [vmem:[%s1 + $0x50] sm:$0xf]
  %v40 = vld [vmem:[%s1 + $0x54] sm:$0xf]
  %v41 = vld [vmem:[%s1 + $0x58] sm:$0xf]
  %v42 = vld [vmem:[%s1 + $0x5c] sm:$0xf]
  %v43 = vld [vmem:[%s1 + $0x60] sm:$0xf]
  %v44 = vld [vmem:[%s1 + $0x64] sm:$0xf]
  %v45 = vld [vmem:[%s1 + $0x68] sm:$0xf]
  %v46 = vld [vmem:[%s1 + $0x6c] sm:$0xf]
  %v47 = vld [vmem:[%s1 + $0x70] sm:$0xf]
  %v48 = vld [vmem:[%s1 + $0x74] sm:$0xf]
  %v49 = vld [vmem:[%s1 + $0x78] sm:$0xf]
  %v50 = vld [vmem:[%s1 + $0x7c] sm:$0xf]
  %v51 = vld [vmem:[%s2] sm:$0x1]
  %v53 = vlaneseq
  %v54 = vshrl.u32 %v53, 7
  %v55 = vsub.s32 0, %v54
  %v56 = vrot.slane %v51, %v55
  %v62 = vunpack.c.l.b16 %v15
  %v63 = vunpack.c.h.b16 %v15
  %v64 = vunpack.c.l.b16 %v16
  %v65 = vunpack.c.h.b16 %v16
  %v66 = vunpack.c.l.b16 %v17
  %v67 = vunpack.c.h.b16 %v17
  %v68 = vunpack.c.l.b16 %v18
  %v69 = vunpack.c.h.b16 %v18
  %v70 = vpack.c.b16 %v64, %v62
  %v71 = vpack.c.b16 %v65, %v63
  %v72 = vpack.c.b16 %v68, %v66
  %v73 = vpack.c.b16 %v69, %v67
  %v110 = vunpack.c.l.b16 %v19
  %v111 = vunpack.c.l.b16 %v20
  %v112 = vunpack.c.l.b16 %v21
  %v113 = vunpack.c.l.b16 %v22
  %v114 = vunpack.c.l.b16 %v23
  %v115 = vunpack.c.l.b16 %v24
  %v116 = vunpack.c.l.b16 %v25
  %v117 = vunpack.c.l.b16 %v26
  %v118 = vunpack.c.l.b16 %v27
  %v119 = vunpack.c.l.b16 %v28
  %v120 = vunpack.c.l.b16 %v29
  %v121 = vunpack.c.l.b16 %v30
  %v122 = vunpack.c.l.b16 %v31
  %v123 = vunpack.c.l.b16 %v32
  %v124 = vunpack.c.l.b16 %v33
  %v125 = vunpack.c.l.b16 %v34
  %v126 = vunpack.c.l.b16 %v35
  %v127 = vunpack.c.l.b16 %v36
  %v128 = vunpack.c.l.b16 %v37
  %v129 = vunpack.c.l.b16 %v38
  %v130 = vunpack.c.l.b16 %v39
  %v131 = vunpack.c.l.b16 %v40
  %v132 = vunpack.c.l.b16 %v41
  %v133 = vunpack.c.l.b16 %v42
  %v134 = vunpack.c.l.b16 %v43
  %v135 = vunpack.c.l.b16 %v44
  %v136 = vunpack.c.l.b16 %v45
  %v137 = vunpack.c.l.b16 %v46
  %v138 = vunpack.c.l.b16 %v47
  %v139 = vunpack.c.l.b16 %v48
  %v140 = vunpack.c.l.b16 %v49
  %v141 = vunpack.c.l.b16 %v50
  %v142 = vpack.c.b16 %v111, %v110
  %v143 = vpack.c.b16 %v113, %v112
  %v144 = vpack.c.b16 %v115, %v114
  %v145 = vpack.c.b16 %v117, %v116
  %v146 = vpack.c.b16 %v119, %v118
  %v147 = vpack.c.b16 %v121, %v120
  %v148 = vpack.c.b16 %v123, %v122
  %v149 = vpack.c.b16 %v125, %v124
  %v150 = vpack.c.b16 %v127, %v126
  %v151 = vpack.c.b16 %v129, %v128
  %v152 = vpack.c.b16 %v131, %v130
  %v153 = vpack.c.b16 %v133, %v132
  %v154 = vpack.c.b16 %v135, %v134
  %v155 = vpack.c.b16 %v137, %v136
  %v156 = vpack.c.b16 %v139, %v138
  %v157 = vpack.c.b16 %v141, %v140
  %174 = vmatprep.subr.bf16.mxu0 0
  %175 = vmatpush1.bf16.msra.mxu0 %v142
  %176 = vmatprep.subr.bf16.mxu0 0
  %177 = vmatpush1.bf16.msra.mxu0 %v143
  %178 = vmatprep.subr.bf16.mxu0 0
  %179 = vmatpush1.bf16.msra.mxu0 %v144
  %180 = vmatprep.subr.bf16.mxu0 0
  %181 = vmatpush1.bf16.msra.mxu0 %v145
  %182 = vmatprep.subr.bf16.mxu0 0
  %183 = vmatpush1.bf16.msra.mxu0 %v146
  %184 = vmatprep.subr.bf16.mxu0 0
  %185 = vmatpush1.bf16.msra.mxu0 %v147
  %186 = vmatprep.subr.bf16.mxu0 0
  %187 = vmatpush1.bf16.msra.mxu0 %v148
  %188 = vmatprep.subr.bf16.mxu0 0
  %189 = vmatpush1.bf16.msra.mxu0 %v149
  %190 = vmatprep.subr.bf16.mxu0 0
  %191 = vmatpush1.bf16.msra.mxu0 %v150
  %192 = vmatprep.subr.bf16.mxu0 0
  %193 = vmatpush1.bf16.msra.mxu0 %v151
  %194 = vmatprep.subr.bf16.mxu0 0
  %195 = vmatpush1.bf16.msra.mxu0 %v152
  %196 = vmatprep.subr.bf16.mxu0 0
  %197 = vmatpush1.bf16.msra.mxu0 %v153
  %198 = vmatprep.subr.bf16.mxu0 0
  %199 = vmatpush1.bf16.msra.mxu0 %v154
  %200 = vmatprep.subr.bf16.mxu0 0
  %201 = vmatpush1.bf16.msra.mxu0 %v155
  %202 = vmatprep.subr.bf16.mxu0 0
  %203 = vmatpush1.bf16.msra.mxu0 %v156
  %204 = vmatprep.subr.bf16.mxu0 0
  %205 = vmatpush1.bf16.msra.mxu0 %v157
  %206 = vmatprep.mubr.bf16.mxu0 %v71
  %207 = vmatmul.mubr.bf16.gmra.mrb[0].mxu0 %v70
  %v208 = vpop.f32.mrb[0].mxu0
  %v209 = vadd.f32 %v56, %v208
  %v210 = vpop.f32.mrb[0].mxu0
  %v211 = vpop.f32.mrb[0].mxu0
  %v212 = vadd.f32 %v56, %v211
  %v213 = vpop.f32.mrb[0].mxu0
  %214 = vmatprep.mubr.bf16.mxu0 %v73
  %215 = vmatmul.mubr.bf16.gmra.mrb[0].mxu0 %v72
  %v216 = vpop.f32.mrb[0].mxu0
  %v217 = vadd.f32 %v56, %v216
  %v218 = vpop.f32.mrb[0].mxu0
  %v219 = vpop.f32.mrb[0].mxu0
  %v220 = vadd.f32 %v56, %v219
  %v221 = vpop.f32.mrb[0].mxu0
  %222 = vdwg.mxu0
  %v223 = vmax.f32 %v209, 0.0
  %v224 = vmax.f32 %v212, 0.0
  %v225 = vmax.f32 %v217, 0.0
  %v226 = vmax.f32 %v220, 0.0
  %v227 = vpack.c.bf16 %v224, %v223
  %v228 = vpack.c.bf16 %v226, %v225
  %v231 = vunpack.c.l.b16 %v227
  %v232 = vunpack.c.h.b16 %v227
  %v233 = vunpack.c.l.b16 %v228
  %v234 = vunpack.c.h.b16 %v228
  %v235 = vpack.c.b16 %v231, %v231
  %v236 = vpack.c.b16 %v232, %v232
  %v237 = vpack.c.b16 %v233, %v233
  %v238 = vpack.c.b16 %v234, %v234
  %243 = vst [vmem:[%s3] sm:$0xf] %v235
  %244 = vst [vmem:[%s3 + $0x4] sm:$0xf] %v236
  %245 = vst [vmem:[%s3 + $0x8] sm:$0xf] %v237
  %246 = vst [vmem:[%s3 + $0xc] sm:$0xf] %v238
  // Predicated region
  $region14: #{conv_encoder_forward.7} parent=0 // pred_check
    _
  $region15: #{conv_encoder_forward.7} parent=0 // pred_check_branch
    %248 = sbr.rel (0) target = $region17
  $region16: #{conv_encoder_forward.7} parent=0 // pred_region
    _
  $region17: #{conv_encoder_forward.7} parent=0 // pred_fallthru
    _
  // Predicated region
  $region18: #{conv_encoder_forward.7} parent=0 // pred_check
    _
  $region19: #{conv_encoder_forward.7} parent=0 // pred_check_branch
    %250 = sbr.rel (0) target = $region21
  $region20: #{conv_encoder_forward.7} parent=0 // pred_region
    _
  $region21: #{conv_encoder_forward.7} parent=0 // pred_fallthru
    _

// kernel: conv_encoder_forward.9
$region0: #{conv_encoder_forward.9}
  #allocation0 [shape = 'u32[]', space=smem, size = 0x4, offset = 0x4, fixed_abs, tag = 'smem constant byte address 0x4 - core index']
  #allocation1 [shape = 'u32[144,128]{1,0:T(1,128)}', space=vmem, size = 0x12000, scoped, tag = 'internal scratch']
  %s0 = inlined_call_operand.vmem [shape: bf16[2,128], index: 0, kind: input, shape index: {}]
  %s1 = inlined_call_operand.vmem [shape: bf16[128,128], index: 1, kind: input, shape index: {}]
  %s2 = inlined_call_operand.vmem [shape: f32[1,128], index: 2, kind: input, shape index: {}]
  %s3 = inlined_call_operand.hbm [shape: f32[2,128], index: 3, kind: output, shape index: {}]
  %s4 = sld [smem:[#allocation0]]
  $region22: #{conv_encoder_forward.9} parent=0
    _
  %s6 = ssub.s32 1, %s4
  %s7 = scalar_select 0, %s6, %s4
  $region1: #{conv_encoder_forward.9} parent=0
    #allocation2 [shape = 'u8[1024]{0}', space=vmem, size = 0x400, scoped, tag = 'output window, operand 0, single buffered']
    #allocation3 [shape = 's32[1]{0}', space=sflag, size = 0x4, scoped, tag = 'scoped memory for conv_encoder_forward.9']
    %8 = vsyncpa [#allocation3], 0
    // Predicated region
    $region2: #{conv_encoder_forward.9} parent=1 // pred_check
      _
    $region3: #{conv_encoder_forward.9} parent=1 // pred_check_branch
      %10 = sbr.rel (0) target = $region5
    $region4: #{conv_encoder_forward.9} parent=1 // pred_region
      _
    $region5: #{conv_encoder_forward.9} parent=1 // pred_fallthru
      _
    // Predicated region
    $region6: #{conv_encoder_forward.9} parent=1 // pred_check
      _
    $region7: #{conv_encoder_forward.9} parent=1 // pred_check_branch
      %12 = sbr.rel (0) target = $region9
    $region8: #{conv_encoder_forward.9} parent=1 // pred_region
      _
    $region9: #{conv_encoder_forward.9} parent=1 // pred_fallthru
      _
    // Predicated region
    $region10: #{conv_encoder_forward.9} parent=1 // pred_check
      _
    $region11: #{conv_encoder_forward.9} parent=1 // pred_check_branch
      %14 = sbr.rel (0) target = $region13
    $region12: #{conv_encoder_forward.9} parent=1 // pred_region
      _
    $region13: #{conv_encoder_forward.9} parent=1 // pred_fallthru
      _
    %v16 = vld [vmem:[%s0] sm:$0x1]
    %v17 = vld [vmem:[%s1] sm:$0xf]
    %v18 = vld [vmem:[%s1 + $0x4] sm:$0xf]
    %v19 = vld [vmem:[%s1 + $0x8] sm:$0xf]
    %v20 = vld [vmem:[%s1 + $0xc] sm:$0xf]
    %v21 = vld [vmem:[%s1 + $0x10] sm:$0xf]
    %v22 = vld [vmem:[%s1 + $0x14] sm:$0xf]
    %v23 = vld [vmem:[%s1 + $0x18] sm:$0xf]
    %v24 = vld [vmem:[%s1 + $0x1c] sm:$0xf]
    %v25 = vld [vmem:[%s1 + $0x20] sm:$0xf]
    %v26 = vld [vmem:[%s1 + $0x24] sm:$0xf]
    %v27 = vld [vmem:[%s1 + $0x28] sm:$0xf]
    %v28 = vld [vmem:[%s1 + $0x2c] sm:$0xf]
    %v29 = vld [vmem:[%s1 + $0x30] sm:$0xf]
    %v30 = vld [vmem:[%s1 + $0x34] sm:$0xf]
    %v31 = vld [vmem:[%s1 + $0x38] sm:$0xf]
    %v32 = vld [vmem:[%s1 + $0x3c] sm:$0xf]
    %v33 = vld [vmem:[%s2] sm:$0x1]
    %v35 = vlaneseq
    %v36 = vshrl.u32 %v35, 7
    %v37 = vsub.s32 0, %v36
    %v38 = vrot.slane %v33, %v37
    %v56 = vunpack.c.l.b16 %v17
    %v57 = vunpack.c.l.b16 %v18
    %v58 = vunpack.c.l.b16 %v19
    %v59 = vunpack.c.l.b16 %v20
    %v60 = vunpack.c.l.b16 %v21
    %v61 = vunpack.c.l.b16 %v22
    %v62 = vunpack.c.l.b16 %v23
    %v63 = vunpack.c.l.b16 %v24
    %v64 = vunpack.c.l.b16 %v25
    %v65 = vunpack.c.l.b16 %v26
    %v66 = vunpack.c.l.b16 %v27
    %v67 = vunpack.c.l.b16 %v28
    %v68 = vunpack.c.l.b16 %v29
    %v69 = vunpack.c.l.b16 %v30
    %v70 = vunpack.c.l.b16 %v31
    %v71 = vunpack.c.l.b16 %v32
    %v72 = vpack.c.b16 %v57, %v56
    %v73 = vpack.c.b16 %v59, %v58
    %v74 = vpack.c.b16 %v61, %v60
    %v75 = vpack.c.b16 %v63, %v62
    %v76 = vpack.c.b16 %v65, %v64
    %v77 = vpack.c.b16 %v67, %v66
    %v78 = vpack.c.b16 %v69, %v68
    %v79 = vpack.c.b16 %v71, %v70
    %88 = vmatprep.subr.bf16.mxu0 0
    %89 = vmatpush1.bf16.msra.mxu0 %v72
    %90 = vmatprep.subr.bf16.mxu0 0
    %91 = vmatpush1.bf16.msra.mxu0 %v73
    %92 = vmatprep.subr.bf16.mxu0 0
    %93 = vmatpush1.bf16.msra.mxu0 %v74
    %94 = vmatprep.subr.bf16.mxu0 0
    %95 = vmatpush1.bf16.msra.mxu0 %v75
    %96 = vmatprep.subr.bf16.mxu0 0
    %97 = vmatpush1.bf16.msra.mxu0 %v76
    %98 = vmatprep.subr.bf16.mxu0 0
    %99 = vmatpush1.bf16.msra.mxu0 %v77
    %100 = vmatprep.subr.bf16.mxu0 0
    %101 = vmatpush1.bf16.msra.mxu0 %v78
    %102 = vmatprep.subr.bf16.mxu0 0
    %103 = vmatpush1.bf16.msra.mxu0 %v79
    %104 = vmatprep.subr.bf16.mxu0 0
    %105 = vmatpush1.bf16.msra.mxu0 0
    %106 = vmatprep.subr.bf16.mxu0 0
    %107 = vmatpush1.bf16.msra.mxu0 0
    %108 = vmatprep.subr.bf16.mxu0 0
    %109 = vmatpush1.bf16.msra.mxu0 0
    %110 = vmatprep.subr.bf16.mxu0 0
    %111 = vmatpush1.bf16.msra.mxu0 0
    %112 = vmatprep.subr.bf16.mxu0 0
    %113 = vmatpush1.bf16.msra.mxu0 0
    %114 = vmatprep.subr.bf16.mxu0 0
    %115 = vmatpush1.bf16.msra.mxu0 0
    %116 = vmatprep.subr.bf16.mxu0 0
    %117 = vmatpush1.bf16.msra.mxu0 0
    %118 = vmatprep.subr.bf16.mxu0 0
    %119 = vmatpush1.bf16.msra.mxu0 0
    %120 = vmatprep.mubr.bf16.mxu0 0
    %121 = vmatmul.mubr.bf16.gmra.mrb[0].mxu0 %v16
    %v122 = vpop.f32.mrb[0].mxu0
    %v123 = vadd.f32 %v38, %v122
    %v124 = vpop.f32.mrb[0].mxu0
    %v125 = vpop.f32.mrb[0].mxu0
    %v126 = vpop.f32.mrb[0].mxu0
    %127 = vdwg.mxu0
    %v128 = vmax.f32 %v123, 0.0
    %129 = vst [vmem:[#allocation2] sm:$0x3] %v128
    // Predicated region
    $region14: #{conv_encoder_forward.9} parent=1 // pred_check
      _
    $region15: #{conv_encoder_forward.9} parent=1 // pred_check_branch
      %131 = sbr.rel (0) target = $region17
    $region16: #{conv_encoder_forward.9} parent=1 // pred_region
      %s133 = ssub.s32 32, 32
      %134 = vsyncadd [#allocation3], %s133
      %s136 = sshll.u32 [#allocation2], 4
      %s137 = int_to_ptr.vmem [resolvable:$true] %s136
      %139 = dma.vmem_to_hbm [thread:$0]  %s137, 32, %s3, [#allocation3]
    $region17: #{conv_encoder_forward.9} parent=1 // pred_fallthru
      _
    // Predicated region
    $region18: #{conv_encoder_forward.9} parent=1 // pred_check
      _
    $region19: #{conv_encoder_forward.9} parent=1 // pred_check_branch
      %141 = sbr.rel (0) target = $region21
    $region20: #{conv_encoder_forward.9} parent=1 // pred_region
      %142 = dma.done [#allocation3], 32
    $region21: #{conv_encoder_forward.9} parent=1 // pred_fallthru
      _
    %143 = vsyncpa [#allocation3], 1

// kernel: conv_encoder_forward.8
$region0: #{conv_encoder_forward.8}
  #allocation0 [shape = 'u32[]', space=smem, size = 0x4, offset = 0x4, fixed_abs, tag = 'smem constant byte address 0x4 - core index']
  #allocation1 [shape = 'u32[144,128]{1,0:T(1,128)}', space=vmem, size = 0x12000, scoped, tag = 'internal scratch']
  %s0 = inlined_call_operand.vmem [shape: bf16[2,512], index: 0, kind: input, shape index: {}]
  %s1 = inlined_call_operand.vmem [shape: bf16[512,128], index: 1, kind: input, shape index: {}]
  %s2 = inlined_call_operand.vmem [shape: f32[1,128], index: 2, kind: input, shape index: {}]
  %s3 = inlined_call_operand.vmem [shape: bf16[2,128], index: 3, kind: output, shape index: {}]
  %s4 = sld [smem:[#allocation0]]
  $region22: #{conv_encoder_forward.8} parent=0
    _
  %s6 = ssub.s32 1, %s4
  %s7 = scalar_select 0, %s6, %s4
  // Predicated region
  $region2: #{conv_encoder_forward.8} parent=0 // pred_check
    _
  $region3: #{conv_encoder_forward.8} parent=0 // pred_check_branch
    %9 = sbr.rel (0) target = $region5
  $region4: #{conv_encoder_forward.8} parent=0 // pred_region
    _
  $region5: #{conv_encoder_forward.8} parent=0 // pred_fallthru
    _
  // Predicated region
  $region6: #{conv_encoder_forward.8} parent=0 // pred_check
    _
  $region7: #{conv_encoder_forward.8} parent=0 // pred_check_branch
    %11 = sbr.rel (0) target = $region9
  $region8: #{conv_encoder_forward.8} parent=0 // pred_region
    _
  $region9: #{conv_encoder_forward.8} parent=0 // pred_fallthru
    _
  // Predicated region
  $region10: #{conv_encoder_forward.8} parent=0 // pred_check
    _
  $region11: #{conv_encoder_forward.8} parent=0 // pred_check_branch
    %13 = sbr.rel (0) target = $region13
  $region12: #{conv_encoder_forward.8} parent=0 // pred_region
    _
  $region13: #{conv_encoder_forward.8} parent=0 // pred_fallthru
    _
  %v15 = vld [vmem:[%s0] sm:$0xf]
  %v16 = vld [vmem:[%s1] sm:$0xf]
  %v17 = vld [vmem:[%s1 + $0x4] sm:$0xf]
  %v18 = vld [vmem:[%s1 + $0x8] sm:$0xf]
  %v19 = vld [vmem:[%s1 + $0xc] sm:$0xf]
  %v20 = vld [vmem:[%s1 + $0x10] sm:$0xf]
  %v21 = vld [vmem:[%s1 + $0x14] sm:$0xf]
  %v22 = vld [vmem:[%s1 + $0x18] sm:$0xf]
  %v23 = vld [vmem:[%s1 + $0x1c] sm:$0xf]
  %v24 = vld [vmem:[%s1 + $0x20] sm:$0xf]
  %v25 = vld [vmem:[%s1 + $0x24] sm:$0xf]
  %v26 = vld [vmem:[%s1 + $0x28] sm:$0xf]
  %v27 = vld [vmem:[%s1 + $0x2c] sm:$0xf]
  %v28 = vld [vmem:[%s1 + $0x30] sm:$0xf]
  %v29 = vld [vmem:[%s1 + $0x34] sm:$0xf]
  %v30 = vld [vmem:[%s1 + $0x38] sm:$0xf]
  %v31 = vld [vmem:[%s1 + $0x3c] sm:$0xf]
  %v32 = vld [vmem:[%s1 + $0x40] sm:$0xf]
  %v33 = vld [vmem:[%s1 + $0x44] sm:$0xf]
  %v34 = vld [vmem:[%s1 + $0x48] sm:$0xf]
  %v35 = vld [vmem:[%s1 + $0x4c] sm:$0xf]
  %v36 = vld [vmem:[%s1 + $0x50] sm:$0xf]
  %v37 = vld [vmem:[%s1 + $0x54] sm:$0xf]
  %v38 = vld [vmem:[%s1 + $0x58] sm:$0xf]
  %v39 = vld [vmem:[%s1 + $0x5c] sm:$0xf]
  %v40 = vld [vmem:[%s1 + $0x60] sm:$0xf]
  %v41 = vld [vmem:[%s1 + $0x64] sm:$0xf]
  %v42 = vld [vmem:[%s1 + $0x68] sm:$0xf]
  %v43 = vld [vmem:[%s1 + $0x6c] sm:$0xf]
  %v44 = vld [vmem:[%s1 + $0x70] sm:$0xf]
  %v45 = vld [vmem:[%s1 + $0x74] sm:$0xf]
  %v46 = vld [vmem:[%s1 + $0x78] sm:$0xf]
  %v47 = vld [vmem:[%s1 + $0x7c] sm:$0xf]
  %v48 = vld [vmem:[%s1 + $0x80] sm:$0xf]
  %v49 = vld [vmem:[%s1 + $0x84] sm:$0xf]
  %v50 = vld [vmem:[%s1 + $0x88] sm:$0xf]
  %v51 = vld [vmem:[%s1 + $0x8c] sm:$0xf]
  %v52 = vld [vmem:[%s1 + $0x90] sm:$0xf]
  %v53 = vld [vmem:[%s1 + $0x94] sm:$0xf]
  %v54 = vld [vmem:[%s1 + $0x98] sm:$0xf]
  %v55 = vld [vmem:[%s1 + $0x9c] sm:$0xf]
  %v56 = vld [vmem:[%s1 + $0xa0] sm:$0xf]
  %v57 = vld [vmem:[%s1 + $0xa4] sm:$0xf]
  %v58 = vld [vmem:[%s1 + $0xa8] sm:$0xf]
  %v59 = vld [vmem:[%s1 + $0xac] sm:$0xf]
  %v60 = vld [vmem:[%s1 + $0xb0] sm:$0xf]
  %v61 = vld [vmem:[%s1 + $0xb4] sm:$0xf]
  %v62 = vld [vmem:[%s1 + $0xb8] sm:$0xf]
  %v63 = vld [vmem:[%s1 + $0xbc] sm:$0xf]
  %v64 = vld [vmem:[%s1 + $0xc0] sm:$0xf]
  %v65 = vld [vmem:[%s1 + $0xc4] sm:$0xf]
  %v66 = vld [vmem:[%s1 + $0xc8] sm:$0xf]
  %v67 = vld [vmem:[%s1 + $0xcc] sm:$0xf]
  %v68 = vld [vmem:[%s1 + $0xd0] sm:$0xf]
  %v69 = vld [vmem:[%s1 + $0xd4] sm:$0xf]
  %v70 = vld [vmem:[%s1 + $0xd8] sm:$0xf]
  %v71 = vld [vmem:[%s1 + $0xdc] sm:$0xf]
  %v72 = vld [vmem:[%s1 + $0xe0] sm:$0xf]
  %v73 = vld [vmem:[%s1 + $0xe4] sm:$0xf]
  %v74 = vld [vmem:[%s1 + $0xe8] sm:$0xf]
  %v75 = vld [vmem:[%s1 + $0xec] sm:$0xf]
  %v76 = vld [vmem:[%s1 + $0xf0] sm:$0xf]
  %v77 = vld [vmem:[%s1 + $0xf4] sm:$0xf]
  %v78 = vld [vmem:[%s1 + $0xf8] sm:$0xf]
  %v79 = vld [vmem:[%s1 + $0xfc] sm:$0xf]
  %v80 = vld [vmem:[%s2] sm:$0x1]
  %v82 = vlaneseq
  %v83 = vshrl.u32 %v82, 7
  %v84 = vsub.s32 0, %v83
  %v85 = vrot.slane %v80, %v84
  %v89 = vunpack.c.l.s4 1966171168
  %v90 = vunpack.c.0.s8 %v89
  %v91 = vlaneseq
  %v92 = vshrl.u32 %v91, 7
  %v93 = vsub.s32 %v90, %v92
  %v94 = vrot.slane %v15, %v93
  %v95 = vcombine.high %v94, %v94
  %v97 = vunpack.c.l.s4 1966171168
  %v98 = vunpack.c.0.s8 %v97
  %v99 = vlaneseq
  %v100 = vshrl.u32 %v99, 7
  %v101 = vsub.s32 %v98, %v100
  %v102 = vrot.slane %v94, %v101
  %v104 = vunpack.c.l.s4 1966171168
  %v105 = vunpack.c.0.s8 %v104
  %v106 = vlaneseq
  %v107 = vshrl.u32 %v106, 7
  %v108 = vsub.s32 %v105, %v107
  %v109 = vrot.slane %v95, %v108
  %v110 = vcombine.high %v102, %v102
  %v111 = vcombine.high %v109, %v109
  %v180 = vunpack.c.l.b16 %v16
  %v181 = vunpack.c.l.b16 %v17
  %v182 = vunpack.c.l.b16 %v18
  %v183 = vunpack.c.l.b16 %v19
  %v184 = vunpack.c.l.b16 %v20
  %v185 = vunpack.c.l.b16 %v21
  %v186 = vunpack.c.l.b16 %v22
  %v187 = vunpack.c.l.b16 %v23
  %v188 = vunpack.c.l.b16 %v24
  %v189 = vunpack.c.l.b16 %v25
  %v190 = vunpack.c.l.b16 %v26
  %v191 = vunpack.c.l.b16 %v27
  %v192 = vunpack.c.l.b16 %v28
  %v193 = vunpack.c.l.b16 %v29
  %v194 = vunpack.c.l.b16 %v30
  %v195 = vunpack.c.l.b16 %v31
  %v196 = vunpack.c.l.b16 %v32
  %v197 = vunpack.c.l.b16 %v33
  %v198 = vunpack.c.l.b16 %v34
  %v199 = vunpack.c.l.b16 %v35
  %v200 = vunpack.c.l.b16 %v36
  %v201 = vunpack.c.l.b16 %v37
  %v202 = vunpack.c.l.b16 %v38
  %v203 = vunpack.c.l.b16 %v39
  %v204 = vunpack.c.l.b16 %v40
  %v205 = vunpack.c.l.b16 %v41
  %v206 = vunpack.c.l.b16 %v42
  %v207 = vunpack.c.l.b16 %v43
  %v208 = vunpack.c.l.b16 %v44
  %v209 = vunpack.c.l.b16 %v45
  %v210 = vunpack.c.l.b16 %v46
  %v211 = vunpack.c.l.b16 %v47
  %v212 = vunpack.c.l.b16 %v48
  %v213 = vunpack.c.l.b16 %v49
  %v214 = vunpack.c.l.b16 %v50
  %v215 = vunpack.c.l.b16 %v51
  %v216 = vunpack.c.l.b16 %v52
  %v217 = vunpack.c.l.b16 %v53
  %v218 = vunpack.c.l.b16 %v54
  %v219 = vunpack.c.l.b16 %v55
  %v220 = vunpack.c.l.b16 %v56
  %v221 = vunpack.c.l.b16 %v57
  %v222 = vunpack.c.l.b16 %v58
  %v223 = vunpack.c.l.b16 %v59
  %v224 = vunpack.c.l.b16 %v60
  %v225 = vunpack.c.l.b16 %v61
  %v226 = vunpack.c.l.b16 %v62
  %v227 = vunpack.c.l.b16 %v63
  %v228 = vunpack.c.l.b16 %v64
  %v229 = vunpack.c.l.b16 %v65
  %v230 = vunpack.c.l.b16 %v66
  %v231 = vunpack.c.l.b16 %v67
  %v232 = vunpack.c.l.b16 %v68
  %v233 = vunpack.c.l.b16 %v69
  %v234 = vunpack.c.l.b16 %v70
  %v235 = vunpack.c.l.b16 %v71
  %v236 = vunpack.c.l.b16 %v72
  %v237 = vunpack.c.l.b16 %v73
  %v238 = vunpack.c.l.b16 %v74
  %v239 = vunpack.c.l.b16 %v75
  %v240 = vunpack.c.l.b16 %v76
  %v241 = vunpack.c.l.b16 %v77
  %v242 = vunpack.c.l.b16 %v78
  %v243 = vunpack.c.l.b16 %v79
  %v244 = vpack.c.b16 %v181, %v180
  %v245 = vpack.c.b16 %v183, %v182
  %v246 = vpack.c.b16 %v185, %v184
  %v247 = vpack.c.b16 %v187, %v186
  %v248 = vpack.c.b16 %v189, %v188
  %v249 = vpack.c.b16 %v191, %v190
  %v250 = vpack.c.b16 %v193, %v192
  %v251 = vpack.c.b16 %v195, %v194
  %v252 = vpack.c.b16 %v197, %v196
  %v253 = vpack.c.b16 %v199, %v198
  %v254 = vpack.c.b16 %v201, %v200
  %v255 = vpack.c.b16 %v203, %v202
  %v256 = vpack.c.b16 %v205, %v204
  %v257 = vpack.c.b16 %v207, %v206
  %v258 = vpack.c.b16 %v209, %v208
  %v259 = vpack.c.b16 %v211, %v210
  %v260 = vpack.c.b16 %v213, %v212
  %v261 = vpack.c.b16 %v215, %v214
  %v262 = vpack.c.b16 %v217, %v216
  %v263 = vpack.c.b16 %v219, %v218
  %v264 = vpack.c.b16 %v221, %v220
  %v265 = vpack.c.b16 %v223, %v222
  %v266 = vpack.c.b16 %v225, %v224
  %v267 = vpack.c.b16 %v227, %v226
  %v268 = vpack.c.b16 %v229, %v228
  %v269 = vpack.c.b16 %v231, %v230
  %v270 = vpack.c.b16 %v233, %v232
  %v271 = vpack.c.b16 %v235, %v234
  %v272 = vpack.c.b16 %v237, %v236
  %v273 = vpack.c.b16 %v239, %v238
  %v274 = vpack.c.b16 %v241, %v240
  %v275 = vpack.c.b16 %v243, %v242
  %308 = vmatprep.subr.bf16.mxu0 0
  %309 = vmatpush1.bf16.msra.mxu0 %v244
  %310 = vmatprep.subr.bf16.mxu0 0
  %311 = vmatpush1.bf16.msra.mxu0 %v245
  %312 = vmatprep.subr.bf16.mxu0 0
  %313 = vmatpush1.bf16.msra.mxu0 %v246
  %314 = vmatprep.subr.bf16.mxu0 0
  %315 = vmatpush1.bf16.msra.mxu0 %v247
  %316 = vmatprep.subr.bf16.mxu0 0
  %317 = vmatpush1.bf16.msra.mxu0 %v248
  %318 = vmatprep.subr.bf16.mxu0 0
  %319 = vmatpush1.bf16.msra.mxu0 %v249
  %320 = vmatprep.subr.bf16.mxu0 0
  %321 = vmatpush1.bf16.msra.mxu0 %v250
  %322 = vmatprep.subr.bf16.mxu0 0
  %323 = vmatpush1.bf16.msra.mxu0 %v251
  %324 = vmatprep.subr.bf16.mxu0 0
  %325 = vmatpush1.bf16.msra.mxu0 %v252
  %326 = vmatprep.subr.bf16.mxu0 0
  %327 = vmatpush1.bf16.msra.mxu0 %v253
  %328 = vmatprep.subr.bf16.mxu0 0
  %329 = vmatpush1.bf16.msra.mxu0 %v254
  %330 = vmatprep.subr.bf16.mxu0 0
  %331 = vmatpush1.bf16.msra.mxu0 %v255
  %332 = vmatprep.subr.bf16.mxu0 0
  %333 = vmatpush1.bf16.msra.mxu0 %v256
  %334 = vmatprep.subr.bf16.mxu0 0
  %335 = vmatpush1.bf16.msra.mxu0 %v257
  %336 = vmatprep.subr.bf16.mxu0 0
  %337 = vmatpush1.bf16.msra.mxu0 %v258
  %338 = vmatprep.subr.bf16.mxu0 0
  %339 = vmatpush1.bf16.msra.mxu0 %v259
  %340 = vmatprep.mubr.bf16.mxu0 %v109
  %341 = vmatmul.mubr.bf16.gmra.mrb[0].mxu0 %v102
  %v342 = vpop.f32.mrb[0].mxu0
  %v343 = vadd.f32 %v85, %v342
  %v344 = vpop.f32.mrb[0].mxu0
  %v345 = vpop.f32.mrb[0].mxu0
  %v346 = vpop.f32.mrb[0].mxu0
  %347 = vdwg.mxu0
  %348 = vmatprep.subr.bf16.mxu0 0
  %349 = vmatpush1.bf16.msra.mxu0 %v260
  %350 = vmatprep.subr.bf16.mxu0 0
  %351 = vmatpush1.bf16.msra.mxu0 %v261
  %352 = vmatprep.subr.bf16.mxu0 0
  %353 = vmatpush1.bf16.msra.mxu0 %v262
  %354 = vmatprep.subr.bf16.mxu0 0
  %355 = vmatpush1.bf16.msra.mxu0 %v263
  %356 = vmatprep.subr.bf16.mxu0 0
  %357 = vmatpush1.bf16.msra.mxu0 %v264
  %358 = vmatprep.subr.bf16.mxu0 0
  %359 = vmatpush1.bf16.msra.mxu0 %v265
  %360 = vmatprep.subr.bf16.mxu0 0
  %361 = vmatpush1.bf16.msra.mxu0 %v266
  %362 = vmatprep.subr.bf16.mxu0 0
  %363 = vmatpush1.bf16.msra.mxu0 %v267
  %364 = vmatprep.subr.bf16.mxu0 0
  %365 = vmatpush1.bf16.msra.mxu0 %v268
  %366 = vmatprep.subr.bf16.mxu0 0
  %367 = vmatpush1.bf16.msra.mxu0 %v269
  %368 = vmatprep.subr.bf16.mxu0 0
  %369 = vmatpush1.bf16.msra.mxu0 %v270
  %370 = vmatprep.subr.bf16.mxu0 0
  %371 = vmatpush1.bf16.msra.mxu0 %v271
  %372 = vmatprep.subr.bf16.mxu0 0
  %373 = vmatpush1.bf16.msra.mxu0 %v272
  %374 = vmatprep.subr.bf16.mxu0 0
  %375 = vmatpush1.bf16.msra.mxu0 %v273
  %376 = vmatprep.subr.bf16.mxu0 0
  %377 = vmatpush1.bf16.msra.mxu0 %v274
  %378 = vmatprep.subr.bf16.mxu0 0
  %379 = vmatpush1.bf16.msra.mxu0 %v275
  %380 = vmatprep.mubr.bf16.mxu0 %v111
  %381 = vmatmul.mubr.bf16.gmra.mrb[0].mxu0 %v110
  %v382 = vpop.f32.mrb[0].mxu0
  %v383 = vadd.f32 %v343, %v382
  %v384 = vpop.f32.mrb[0].mxu0
  %v385 = vpop.f32.mrb[0].mxu0
  %v386 = vpop.f32.mrb[0].mxu0
  %387 = vdwg.mxu0
  %v388 = vmax.f32 %v383, 0.0
  %v389 = vpack.c.bf16 %v388, %v388
  %390 = vst [vmem:[%s3] sm:$0x1] %v389
  // Predicated region
  $region14: #{conv_encoder_forward.8} parent=0 // pred_check
    _
  $region15: #{conv_encoder_forward.8} parent=0 // pred_check_branch
    %392 = sbr.rel (0) target = $region17
  $region16: #{conv_encoder_forward.8} parent=0 // pred_region
    _
  $region17: #{conv_encoder_forward.8} parent=0 // pred_fallthru
    _
  // Predicated region
  $region18: #{conv_encoder_forward.8} parent=0 // pred_check
    _
  $region19: #{conv_encoder_forward.8} parent=0 // pred_check_branch
    %394 = sbr.rel (0) target = $region21
  $region20: #{conv_encoder_forward.8} parent=0 // pred_region
    _
  $region21: #{conv_encoder_forward.8} parent=0 // pred_fallthru
    _

</llo_original>
